<compile_context>
chip_gen: v6e
topology: v6e:2x2x1
jax: 0.10.0
libtpu: 0.0.40
codegen_flags: <defaults>
</compile_context>

<pallas_src>
import functools

import numpy as np
import jax
import jax.numpy as jnp
from jax.experimental import pallas as pl
from jax.experimental.pallas import tpu as pltpu


def _diffeq_kernel(dt_ref,     # SMEM (T_pad-1,) f32  -- step sizes (scalar prefetch)
                   y0_ref,     # VMEM (C, TILE)       -- initial latent state
                   wT_ref,     # VMEM (C, C)          -- transposed dynamics matrix
                   b_ref,      # VMEM (C, TILE)       -- pre-broadcast dynamics bias
                   out_ref,    # VMEM (Tc, C, TILE)   -- trajectory slab for this block
                   carry_ref,  # VMEM (C, TILE) f32   -- Euler carry across time chunks
                   *, unroll):
    tc = pl.program_id(2)                   # time-chunk index (innermost, "arbitrary")
    t_chunk = out_ref.shape[0]

    w_t = wT_ref[...].astype(jnp.float32)
    b_full = b_ref[...].astype(jnp.float32)     # already (C, TILE): no in-kernel broadcast

    def euler_step(out_idx, y):
        # ode_func: dy/dt = tanh(W^T y + b), lane-dense (C, TILE) layout (full 128-lane vregs).
        g = tc * t_chunk + out_idx               # global output (time) index >= 1
        f = jnp.tanh(jnp.dot(w_t, y, preferred_element_type=jnp.float32) + b_full)
        y_new = y + dt_ref[g - 1] * f            # explicit Euler step
        out_ref[out_idx] = y_new.astype(out_ref.dtype)
        return y_new

    @pl.when(tc == 0)
    def _first_chunk():
        y0 = y0_ref[...].astype(jnp.float32)
        out_ref[0] = y0.astype(out_ref.dtype)    # odeint returns y0 at time_steps[0]
        y_last = y0
        if t_chunk > 1:
            y_last = jax.lax.fori_loop(1, t_chunk, euler_step, y0,
                                       unroll=min(unroll, t_chunk - 1))
        carry_ref[...] = y_last

    @pl.when(tc > 0)
    def _later_chunks():
        y = carry_ref[...]
        y_last = jax.lax.fori_loop(0, t_chunk, euler_step, y,
                                   unroll=min(unroll, t_chunk))
        carry_ref[...] = y_last


def _num_tensorcores():
    """Best-effort TensorCores-per-device (only used for the B==1 split heuristic)."""
    try:
        kind = jax.devices()[0].device_kind.lower()
        if "v7" in kind or "v4" in kind:
            return 2
    except Exception:
        pass
    return 1


def diffeq_solver_forward(first_point, time_steps, W, b, *,
                          out_dtype=None, time_chunk=None,
                          vmem_budget_bytes=24 << 20):
    """first_point: (B, C, H, W) NCHW.  time_steps: (T,).  Returns (B, T, C, H, W)."""
    B, C, H, W_sp = first_point.shape
    T = int(time_steps.shape[0])
    HW = H * W_sp
    out_dtype = first_point.dtype if out_dtype is None else out_dtype

    if T == 1:
        # odeint at a single time point returns the initial state.
        return first_point[:, None].astype(out_dtype)

    # NCHW -> (B, C, H*W); pad the spatial (lane) axis to a multiple of 128 so every
    # store is lane-dense/unmasked.  Only reshapes + a cheap pad in plain JAX.
    HW_pad = max(128, -(-HW // 128) * 128)
    y0 = first_point.reshape(B, C, HW)
    if HW_pad != HW:
        y0 = jnp.pad(y0, ((0, 0), (0, 0), (0, HW_pad - HW)))

    # Lane tile: largest multiple of 128 (capped at 512) dividing HW_pad.  Bigger tiles
    # fill the serial dot->add->tanh->mul chain; past 512 the f32 carry spills vregs.
    tile = max(t for t in range(128, min(HW_pad, 512) + 1, 128) if HW_pad % t == 0)
    num_tiles = HW_pad // tile
    # Only manufacture a second spatial block when B==1 on a multi-TC chip; otherwise the
    # batch axis already provides parallel blocks and splitting just halves vector width.
    if B == 1 and num_tiles == 1 and HW_pad >= 256 and _num_tensorcores() >= 2:
        for cand in range(tile - 128, 0, -128):
            if HW_pad % cand == 0:
                tile, num_tiles = cand, HW_pad // cand
                break

    out_bytes = jnp.dtype(out_dtype).itemsize
    in_bytes = jnp.dtype(first_point.dtype).itemsize

    # Time chunking: the double-buffered (Tc, C, tile) output slab dominates VMEM.  Keep
    # the lane tile and chunk T to fit the explicit budget instead of shrinking tile.
    fixed_bytes = (2 * C * tile * in_bytes      # y0 block (double-buffered)
                   + 2 * C * tile * 4           # bias block
                   + 2 * C * C * 4              # W^T block
                   + C * tile * 4)              # carry scratch
    avail = max(vmem_budget_bytes - fixed_bytes, 2 * C * tile * out_bytes)
    t_chunk = max(1, min(T, avail // (2 * C * tile * out_bytes)))
    if time_chunk is not None:
        t_chunk = max(1, min(T, int(time_chunk)))
    num_chunks = -(-T // t_chunk)
    T_pad = num_chunks * t_chunk

    # Host-side parameter prep (tiny arrays).
    w_t = jnp.transpose(W).astype(jnp.float32)               # kernel computes tanh(W^T y + b)
    b_bcast = jnp.broadcast_to(b.astype(jnp.float32).reshape(C, 1), (C, tile))
    dt = (time_steps[1:] - time_steps[:-1]).astype(jnp.float32)
    if T_pad != T:
        dt = jnp.concatenate([dt, jnp.zeros((T_pad - T,), jnp.float32)])  # padded steps: dt=0

    unroll = 8 if tile <= 512 else 4

    grid_spec = pltpu.PrefetchScalarGridSpec(
        num_scalar_prefetch=1,                                # dt lands in SMEM
        grid=(B, num_tiles, num_chunks),
        in_specs=[
            pl.BlockSpec((None, C, tile), lambda bi, sj, tc, dts: (bi, 0, sj)),   # y0
            pl.BlockSpec((C, C),          lambda bi, sj, tc, dts: (0, 0)),        # W^T
            pl.BlockSpec((C, tile),       lambda bi, sj, tc, dts: (0, 0)),        # bias
        ],
        out_specs=pl.BlockSpec((None, t_chunk, C, tile),
                               lambda bi, sj, tc, dts: (bi, tc, 0, sj)),
        scratch_shapes=[pltpu.VMEM((C, tile), jnp.float32)],  # Euler carry across chunks
    )

    block_bytes = 2 * t_chunk * C * tile * out_bytes + fixed_bytes
    vmem_limit = int(min(max(block_bytes * 3 // 2 + (4 << 20), 16 << 20), 48 << 20))

    out = pl.pallas_call(
        functools.partial(_diffeq_kernel, unroll=unroll),
        out_shape=jax.ShapeDtypeStruct((B, T_pad, C, HW_pad), out_dtype),
        grid_spec=grid_spec,
        compiler_params=pltpu.CompilerParams(
            dimension_semantics=("parallel", "parallel", "arbitrary"),
            vmem_limit_bytes=vmem_limit,
        ),
    )(dt, y0, w_t, b_bcast)

    # Strip time/spatial padding; (B, T, C, H*W) -> (B, T, C, H, W)
    #   == permute(1,0,2,3,4) of odeint's (T, B, C, H, W).
    out = out[:, :T, :, :HW]
    return out.reshape(B, T, C, H, W_sp)


def _reference(first_point, time_steps, W, b):
    """Pure-JAX reference of the same fixed-step Euler odeint."""
    B, C, H, W_sp = first_point.shape
    Tn = int(time_steps.shape[0])
    y = jnp.transpose(first_point, (0, 2, 3, 1)).reshape(B * H * W_sp, C).astype(jnp.float32)
    ys = [y]
    for i in range(1, Tn):
        dt = time_steps[i] - time_steps[i - 1]
        f = jnp.tanh(y @ W.astype(jnp.float32) + b.astype(jnp.float32)[None, :])
        y = y + dt * f
        ys.append(y)
    out = jnp.stack(ys, 0).reshape(Tn, B, H, W_sp, C)
    return jnp.transpose(out, (1, 0, 4, 2, 3))


if __name__ == "__main__":
    # Small shapes consistent with the module: first_point is 4-D (B, latents, H, W)
    B, latents, H, W_sp, T = 2, 32, 16, 16, 8

    key = jax.random.PRNGKey(0)
    k1, k2, k3 = jax.random.split(key, 3)

    first_point = jax.random.normal(k1, (B, latents, H, W_sp), dtype=jnp.float32)
    time_steps = jnp.linspace(0.0, 1.0, T, dtype=jnp.float32)

    # Deterministic synthetic ode_func parameters (1x1-conv latent dynamics)
    W_param = 0.1 * jax.random.normal(k2, (latents, latents), dtype=jnp.float32) / jnp.sqrt(latents * 1.0)
    b_param = 0.01 * jax.random.normal(k3, (latents,), dtype=jnp.float32)

    ref = _reference(first_point, time_steps, W_param, b_param)

    # 1) Default path (single time chunk, tile = full 256-lane spatial block).
    pred_y = jax.block_until_ready(diffeq_solver_forward(first_point, time_steps, W_param, b_param))
    assert pred_y.shape == (B, T, latents, H, W_sp)
    np.testing.assert_allclose(np.asarray(pred_y), np.asarray(ref), rtol=1e-5, atol=1e-5)

    # 2) Time-chunked path (carry persists in VMEM scratch across the "arbitrary" axis).
    pred_chunked = jax.block_until_ready(
        diffeq_solver_forward(first_point, time_steps, W_param, b_param, time_chunk=3))
    np.testing.assert_allclose(np.asarray(pred_chunked), np.asarray(ref), rtol=1e-5, atol=1e-5)

    # 3) Spatial-padding path (H*W=100 -> padded to 128 lanes, pad sliced off).
    fp_small = jax.random.normal(k1, (2, 8, 10, 10), dtype=jnp.float32)
    ts_small = jnp.linspace(0.0, 0.5, 5, dtype=jnp.float32)
    W_small = 0.1 * jax.random.normal(k2, (8, 8), dtype=jnp.float32)
    b_small = 0.01 * jax.random.normal(k3, (8,), dtype=jnp.float32)
    pred_small = jax.block_until_ready(diffeq_solver_forward(fp_small, ts_small, W_small, b_small))
    np.testing.assert_allclose(np.asarray(pred_small),
                               np.asarray(_reference(fp_small, ts_small, W_small, b_small)),
                               rtol=1e-5, atol=1e-5)

    print("KERNEL_OK")
</pallas_src>

<mosaic_0001>
module attributes {stable_mosaic.version = 11 : i64} {
  func.func @_diffeq_kernel(%arg0: i32, %arg1: i32, %arg2: i32, %arg3: memref<7xf32, #tpu.memory_space<smem>>, %arg4: memref<1x32x256xf32, #tpu.memory_space<vmem>>, %arg5: memref<32x32xf32, #tpu.memory_space<vmem>>, %arg6: memref<32x256xf32, #tpu.memory_space<vmem>>, %arg7: memref<1x8x32x256xf32, #tpu.memory_space<vmem>>, %arg8: memref<32x256xf32, #tpu.memory_space<vmem>>) attributes {dimension_semantics = [#tpu.dimension_semantics<parallel>, #tpu.dimension_semantics<parallel>, #tpu.dimension_semantics<arbitrary>], iteration_bounds = array<i64: 2, 1, 1>, scalar_prefetch = 1 : i64, scratch_operands = 1 : i64, tpu.core_type = #tpu.core_type<tc>, window_params = [{transform_indices = @transform_0, window_bounds = array<i64: 1, 32, 256>}, {pipeline_mode = #tpu.pipeline_mode<synchronous>, transform_indices = @transform_1, window_bounds = array<i64: 32, 32>}, {pipeline_mode = #tpu.pipeline_mode<synchronous>, transform_indices = @transform_2, window_bounds = array<i64: 32, 256>}, {transform_indices = @transform_3, window_bounds = array<i64: 1, 8, 32, 256>}]} {
    %c0 = arith.constant 0 : index
    %c0_0 = arith.constant 0 : index
    %0 = vector.load %arg5[%c0, %c0_0] : memref<32x32xf32, #tpu.memory_space<vmem>>, vector<32x32xf32>
    %c0_1 = arith.constant 0 : index
    %c0_2 = arith.constant 0 : index
    %1 = vector.load %arg6[%c0_1, %c0_2] : memref<32x256xf32, #tpu.memory_space<vmem>>, vector<32x256xf32>
    %c0_i32 = arith.constant 0 : i32
    %2 = arith.cmpi eq, %arg2, %c0_i32 : i32
    %3 = arith.extui %2 : i1 to i32
    %c0_i32_3 = arith.constant 0 : i32
    %4 = arith.cmpi ne, %3, %c0_i32_3 : i32
    scf.if %4 {
      %c0_6 = arith.constant 0 : index
      %c0_7 = arith.constant 0 : index
      %c0_8 = arith.constant 0 : index
      %8 = vector.load %arg4[%c0_6, %c0_7, %c0_8] : memref<1x32x256xf32, #tpu.memory_space<vmem>>, vector<1x32x256xf32>
      %9 = vector.shape_cast %8 : vector<1x32x256xf32> to vector<32x256xf32>
      %c0_9 = arith.constant 0 : index
      %c0_10 = arith.constant 0 : index
      %c0_11 = arith.constant 0 : index
      %c0_12 = arith.constant 0 : index
      %10 = vector.load %arg7[%c0_9, %c0_10, %c0_11, %c0_12] : memref<1x8x32x256xf32, #tpu.memory_space<vmem>>, vector<1x1x32x256xf32>
      %11 = vector.shape_cast %10 : vector<1x1x32x256xf32> to vector<32x256xf32>
      %12 = vector.shape_cast %9 : vector<32x256xf32> to vector<1x1x32x256xf32>
      tpu.vector_store %arg7[%c0_9, %c0_10, %c0_11, %c0_12], %12 {strides = array<i32>} : memref<1x8x32x256xf32, #tpu.memory_space<vmem>>, vector<1x1x32x256xf32>,
      %c1_i32 = arith.constant 1 : i32
      %c8_i32 = arith.constant 8 : i32
      %13 = arith.muli %arg2, %c8_i32 : i32
      %14 = arith.addi %13, %c1_i32 : i32
      %cst = arith.constant dense<0.000000e+00> : vector<32x256xf32>
      %15 = tpu.matmul %0, %9, %cst {dimension_numbers = #tpu.dot_dimension_numbers<[1], [0], [0], [1], [0, 0, 1, 1], [], []>} : vector<32x32xf32>, vector<32x256xf32>, vector<32x256xf32> -> vector<32x256xf32>
      %16 = arith.addf %15, %1 : vector<32x256xf32>
      %17 = math.tanh %16 : vector<32x256xf32>
      %c1_i32_13 = arith.constant 1 : i32
      %18 = arith.subi %14, %c1_i32_13 : i32
      %19 = arith.index_cast %18 : i32 to index
      %20 = memref.load %arg3[%19] : memref<7xf32, #tpu.memory_space<smem>>
      %21 = vector.broadcast %20 : f32 to vector<32x256xf32>
      %22 = arith.mulf %21, %17 : vector<32x256xf32>
      %23 = arith.addf %9, %22 : vector<32x256xf32>
      %c0_14 = arith.constant 0 : index
      %24 = arith.index_cast %c1_i32 : i32 to index
      %c0_15 = arith.constant 0 : index
      %c0_16 = arith.constant 0 : index
      %25 = vector.load %arg7[%c0_14, %24, %c0_15, %c0_16] : memref<1x8x32x256xf32, #tpu.memory_space<vmem>>, vector<1x1x32x256xf32>
      %26 = vector.shape_cast %25 : vector<1x1x32x256xf32> to vector<32x256xf32>
      %27 = vector.shape_cast %23 : vector<32x256xf32> to vector<1x1x32x256xf32>
      tpu.vector_store %arg7[%c0_14, %24, %c0_15, %c0_16], %27 {strides = array<i32>} : memref<1x8x32x256xf32, #tpu.memory_space<vmem>>, vector<1x1x32x256xf32>,
      %c2_i32 = arith.constant 2 : i32
      %c8_i32_17 = arith.constant 8 : i32
      %28 = arith.muli %arg2, %c8_i32_17 : i32
      %29 = arith.addi %28, %c2_i32 : i32
      %cst_18 = arith.constant dense<0.000000e+00> : vector<32x256xf32>
      %30 = tpu.matmul %0, %23, %cst_18 {dimension_numbers = #tpu.dot_dimension_numbers<[1], [0], [0], [1], [0, 0, 1, 1], [], []>} : vector<32x32xf32>, vector<32x256xf32>, vector<32x256xf32> -> vector<32x256xf32>
      %31 = arith.addf %30, %1 : vector<32x256xf32>
      %32 = math.tanh %31 : vector<32x256xf32>
      %c1_i32_19 = arith.constant 1 : i32
      %33 = arith.subi %29, %c1_i32_19 : i32
      %34 = arith.index_cast %33 : i32 to index
      %35 = memref.load %arg3[%34] : memref<7xf32, #tpu.memory_space<smem>>
      %36 = vector.broadcast %35 : f32 to vector<32x256xf32>
      %37 = arith.mulf %36, %32 : vector<32x256xf32>
      %38 = arith.addf %23, %37 : vector<32x256xf32>
      %c0_20 = arith.constant 0 : index
      %39 = arith.index_cast %c2_i32 : i32 to index
      %c0_21 = arith.constant 0 : index
      %c0_22 = arith.constant 0 : index
      %40 = vector.load %arg7[%c0_20, %39, %c0_21, %c0_22] : memref<1x8x32x256xf32, #tpu.memory_space<vmem>>, vector<1x1x32x256xf32>
      %41 = vector.shape_cast %40 : vector<1x1x32x256xf32> to vector<32x256xf32>
      %42 = vector.shape_cast %38 : vector<32x256xf32> to vector<1x1x32x256xf32>
      tpu.vector_store %arg7[%c0_20, %39, %c0_21, %c0_22], %42 {strides = array<i32>} : memref<1x8x32x256xf32, #tpu.memory_space<vmem>>, vector<1x1x32x256xf32>,
      %c3_i32 = arith.constant 3 : i32
      %c8_i32_23 = arith.constant 8 : i32
      %43 = arith.muli %arg2, %c8_i32_23 : i32
      %44 = arith.addi %43, %c3_i32 : i32
      %cst_24 = arith.constant dense<0.000000e+00> : vector<32x256xf32>
      %45 = tpu.matmul %0, %38, %cst_24 {dimension_numbers = #tpu.dot_dimension_numbers<[1], [0], [0], [1], [0, 0, 1, 1], [], []>} : vector<32x32xf32>, vector<32x256xf32>, vector<32x256xf32> -> vector<32x256xf32>
      %46 = arith.addf %45, %1 : vector<32x256xf32>
      %47 = math.tanh %46 : vector<32x256xf32>
      %c1_i32_25 = arith.constant 1 : i32
      %48 = arith.subi %44, %c1_i32_25 : i32
      %49 = arith.index_cast %48 : i32 to index
      %50 = memref.load %arg3[%49] : memref<7xf32, #tpu.memory_space<smem>>
      %51 = vector.broadcast %50 : f32 to vector<32x256xf32>
      %52 = arith.mulf %51, %47 : vector<32x256xf32>
      %53 = arith.addf %38, %52 : vector<32x256xf32>
      %c0_26 = arith.constant 0 : index
      %54 = arith.index_cast %c3_i32 : i32 to index
      %c0_27 = arith.constant 0 : index
      %c0_28 = arith.constant 0 : index
      %55 = vector.load %arg7[%c0_26, %54, %c0_27, %c0_28] : memref<1x8x32x256xf32, #tpu.memory_space<vmem>>, vector<1x1x32x256xf32>
      %56 = vector.shape_cast %55 : vector<1x1x32x256xf32> to vector<32x256xf32>
      %57 = vector.shape_cast %53 : vector<32x256xf32> to vector<1x1x32x256xf32>
      tpu.vector_store %arg7[%c0_26, %54, %c0_27, %c0_28], %57 {strides = array<i32>} : memref<1x8x32x256xf32, #tpu.memory_space<vmem>>, vector<1x1x32x256xf32>,
      %c4_i32 = arith.constant 4 : i32
      %c8_i32_29 = arith.constant 8 : i32
      %58 = arith.muli %arg2, %c8_i32_29 : i32
      %59 = arith.addi %58, %c4_i32 : i32
      %cst_30 = arith.constant dense<0.000000e+00> : vector<32x256xf32>
      %60 = tpu.matmul %0, %53, %cst_30 {dimension_numbers = #tpu.dot_dimension_numbers<[1], [0], [0], [1], [0, 0, 1, 1], [], []>} : vector<32x32xf32>, vector<32x256xf32>, vector<32x256xf32> -> vector<32x256xf32>
      %61 = arith.addf %60, %1 : vector<32x256xf32>
      %62 = math.tanh %61 : vector<32x256xf32>
      %c1_i32_31 = arith.constant 1 : i32
      %63 = arith.subi %59, %c1_i32_31 : i32
      %64 = arith.index_cast %63 : i32 to index
      %65 = memref.load %arg3[%64] : memref<7xf32, #tpu.memory_space<smem>>
      %66 = vector.broadcast %65 : f32 to vector<32x256xf32>
      %67 = arith.mulf %66, %62 : vector<32x256xf32>
      %68 = arith.addf %53, %67 : vector<32x256xf32>
      %c0_32 = arith.constant 0 : index
      %69 = arith.index_cast %c4_i32 : i32 to index
      %c0_33 = arith.constant 0 : index
      %c0_34 = arith.constant 0 : index
      %70 = vector.load %arg7[%c0_32, %69, %c0_33, %c0_34] : memref<1x8x32x256xf32, #tpu.memory_space<vmem>>, vector<1x1x32x256xf32>
      %71 = vector.shape_cast %70 : vector<1x1x32x256xf32> to vector<32x256xf32>
      %72 = vector.shape_cast %68 : vector<32x256xf32> to vector<1x1x32x256xf32>
      tpu.vector_store %arg7[%c0_32, %69, %c0_33, %c0_34], %72 {strides = array<i32>} : memref<1x8x32x256xf32, #tpu.memory_space<vmem>>, vector<1x1x32x256xf32>,
      %c5_i32 = arith.constant 5 : i32
      %c8_i32_35 = arith.constant 8 : i32
      %73 = arith.muli %arg2, %c8_i32_35 : i32
      %74 = arith.addi %73, %c5_i32 : i32
      %cst_36 = arith.constant dense<0.000000e+00> : vector<32x256xf32>
      %75 = tpu.matmul %0, %68, %cst_36 {dimension_numbers = #tpu.dot_dimension_numbers<[1], [0], [0], [1], [0, 0, 1, 1], [], []>} : vector<32x32xf32>, vector<32x256xf32>, vector<32x256xf32> -> vector<32x256xf32>
      %76 = arith.addf %75, %1 : vector<32x256xf32>
      %77 = math.tanh %76 : vector<32x256xf32>
      %c1_i32_37 = arith.constant 1 : i32
      %78 = arith.subi %74, %c1_i32_37 : i32
      %79 = arith.index_cast %78 : i32 to index
      %80 = memref.load %arg3[%79] : memref<7xf32, #tpu.memory_space<smem>>
      %81 = vector.broadcast %80 : f32 to vector<32x256xf32>
      %82 = arith.mulf %81, %77 : vector<32x256xf32>
      %83 = arith.addf %68, %82 : vector<32x256xf32>
      %c0_38 = arith.constant 0 : index
      %84 = arith.index_cast %c5_i32 : i32 to index
      %c0_39 = arith.constant 0 : index
      %c0_40 = arith.constant 0 : index
      %85 = vector.load %arg7[%c0_38, %84, %c0_39, %c0_40] : memref<1x8x32x256xf32, #tpu.memory_space<vmem>>, vector<1x1x32x256xf32>
      %86 = vector.shape_cast %85 : vector<1x1x32x256xf32> to vector<32x256xf32>
      %87 = vector.shape_cast %83 : vector<32x256xf32> to vector<1x1x32x256xf32>
      tpu.vector_store %arg7[%c0_38, %84, %c0_39, %c0_40], %87 {strides = array<i32>} : memref<1x8x32x256xf32, #tpu.memory_space<vmem>>, vector<1x1x32x256xf32>,
      %c6_i32 = arith.constant 6 : i32
      %c8_i32_41 = arith.constant 8 : i32
      %88 = arith.muli %arg2, %c8_i32_41 : i32
      %89 = arith.addi %88, %c6_i32 : i32
      %cst_42 = arith.constant dense<0.000000e+00> : vector<32x256xf32>
      %90 = tpu.matmul %0, %83, %cst_42 {dimension_numbers = #tpu.dot_dimension_numbers<[1], [0], [0], [1], [0, 0, 1, 1], [], []>} : vector<32x32xf32>, vector<32x256xf32>, vector<32x256xf32> -> vector<32x256xf32>
      %91 = arith.addf %90, %1 : vector<32x256xf32>
      %92 = math.tanh %91 : vector<32x256xf32>
      %c1_i32_43 = arith.constant 1 : i32
      %93 = arith.subi %89, %c1_i32_43 : i32
      %94 = arith.index_cast %93 : i32 to index
      %95 = memref.load %arg3[%94] : memref<7xf32, #tpu.memory_space<smem>>
      %96 = vector.broadcast %95 : f32 to vector<32x256xf32>
      %97 = arith.mulf %96, %92 : vector<32x256xf32>
      %98 = arith.addf %83, %97 : vector<32x256xf32>
      %c0_44 = arith.constant 0 : index
      %99 = arith.index_cast %c6_i32 : i32 to index
      %c0_45 = arith.constant 0 : index
      %c0_46 = arith.constant 0 : index
      %100 = vector.load %arg7[%c0_44, %99, %c0_45, %c0_46] : memref<1x8x32x256xf32, #tpu.memory_space<vmem>>, vector<1x1x32x256xf32>
      %101 = vector.shape_cast %100 : vector<1x1x32x256xf32> to vector<32x256xf32>
      %102 = vector.shape_cast %98 : vector<32x256xf32> to vector<1x1x32x256xf32>
      tpu.vector_store %arg7[%c0_44, %99, %c0_45, %c0_46], %102 {strides = array<i32>} : memref<1x8x32x256xf32, #tpu.memory_space<vmem>>, vector<1x1x32x256xf32>,
      %c7_i32 = arith.constant 7 : i32
      %c8_i32_47 = arith.constant 8 : i32
      %103 = arith.muli %arg2, %c8_i32_47 : i32
      %104 = arith.addi %103, %c7_i32 : i32
      %cst_48 = arith.constant dense<0.000000e+00> : vector<32x256xf32>
      %105 = tpu.matmul %0, %98, %cst_48 {dimension_numbers = #tpu.dot_dimension_numbers<[1], [0], [0], [1], [0, 0, 1, 1], [], []>} : vector<32x32xf32>, vector<32x256xf32>, vector<32x256xf32> -> vector<32x256xf32>
      %106 = arith.addf %105, %1 : vector<32x256xf32>
      %107 = math.tanh %106 : vector<32x256xf32>
      %c1_i32_49 = arith.constant 1 : i32
      %108 = arith.subi %104, %c1_i32_49 : i32
      %109 = arith.index_cast %108 : i32 to index
      %110 = memref.load %arg3[%109] : memref<7xf32, #tpu.memory_space<smem>>
      %111 = vector.broadcast %110 : f32 to vector<32x256xf32>
      %112 = arith.mulf %111, %107 : vector<32x256xf32>
      %113 = arith.addf %98, %112 : vector<32x256xf32>
      %c0_50 = arith.constant 0 : index
      %114 = arith.index_cast %c7_i32 : i32 to index
      %c0_51 = arith.constant 0 : index
      %c0_52 = arith.constant 0 : index
      %115 = vector.load %arg7[%c0_50, %114, %c0_51, %c0_52] : memref<1x8x32x256xf32, #tpu.memory_space<vmem>>, vector<1x1x32x256xf32>
      %116 = vector.shape_cast %115 : vector<1x1x32x256xf32> to vector<32x256xf32>
      %117 = vector.shape_cast %113 : vector<32x256xf32> to vector<1x1x32x256xf32>
      tpu.vector_store %arg7[%c0_50, %114, %c0_51, %c0_52], %117 {strides = array<i32>} : memref<1x8x32x256xf32, #tpu.memory_space<vmem>>, vector<1x1x32x256xf32>,
      %c7_i32_53 = arith.constant 7 : i32
      %c0_54 = arith.constant 0 : index
      %c0_55 = arith.constant 0 : index
      %118 = vector.load %arg8[%c0_54, %c0_55] : memref<32x256xf32, #tpu.memory_space<vmem>>, vector<32x256xf32>
      tpu.vector_store %arg8[%c0_54, %c0_55], %113 {strides = array<i32>} : memref<32x256xf32, #tpu.memory_space<vmem>>, vector<32x256xf32>,
    } else {
    }
    %c0_i32_4 = arith.constant 0 : i32
    %5 = arith.cmpi sgt, %arg2, %c0_i32_4 : i32
    %6 = arith.extui %5 : i1 to i32
    %c0_i32_5 = arith.constant 0 : i32
    %7 = arith.cmpi ne, %6, %c0_i32_5 : i32
    scf.if %7 {
      %c0_6 = arith.constant 0 : index
      %c0_7 = arith.constant 0 : index
      %8 = vector.load %arg8[%c0_6, %c0_7] : memref<32x256xf32, #tpu.memory_space<vmem>>, vector<32x256xf32>
      %c0_i32_8 = arith.constant 0 : i32
      %c8_i32 = arith.constant 8 : i32
      %9 = arith.muli %arg2, %c8_i32 : i32
      %10 = arith.addi %9, %c0_i32_8 : i32
      %cst = arith.constant dense<0.000000e+00> : vector<32x256xf32>
      %11 = tpu.matmul %0, %8, %cst {dimension_numbers = #tpu.dot_dimension_numbers<[1], [0], [0], [1], [0, 0, 1, 1], [], []>} : vector<32x32xf32>, vector<32x256xf32>, vector<32x256xf32> -> vector<32x256xf32>
      %12 = arith.addf %11, %1 : vector<32x256xf32>
      %13 = math.tanh %12 : vector<32x256xf32>
      %c1_i32 = arith.constant 1 : i32
      %14 = arith.subi %10, %c1_i32 : i32
      %15 = arith.index_cast %14 : i32 to index
      %16 = memref.load %arg3[%15] : memref<7xf32, #tpu.memory_space<smem>>
      %17 = vector.broadcast %16 : f32 to vector<32x256xf32>
      %18 = arith.mulf %17, %13 : vector<32x256xf32>
      %19 = arith.addf %8, %18 : vector<32x256xf32>
      %c0_9 = arith.constant 0 : index
      %20 = arith.index_cast %c0_i32_8 : i32 to index
      %c0_10 = arith.constant 0 : index
      %c0_11 = arith.constant 0 : index
      %21 = vector.load %arg7[%c0_9, %20, %c0_10, %c0_11] : memref<1x8x32x256xf32, #tpu.memory_space<vmem>>, vector<1x1x32x256xf32>
      %22 = vector.shape_cast %21 : vector<1x1x32x256xf32> to vector<32x256xf32>
      %23 = vector.shape_cast %19 : vector<32x256xf32> to vector<1x1x32x256xf32>
      tpu.vector_store %arg7[%c0_9, %20, %c0_10, %c0_11], %23 {strides = array<i32>} : memref<1x8x32x256xf32, #tpu.memory_space<vmem>>, vector<1x1x32x256xf32>,
      %c1_i32_12 = arith.constant 1 : i32
      %c8_i32_13 = arith.constant 8 : i32
      %24 = arith.muli %arg2, %c8_i32_13 : i32
      %25 = arith.addi %24, %c1_i32_12 : i32
      %cst_14 = arith.constant dense<0.000000e+00> : vector<32x256xf32>
      %26 = tpu.matmul %0, %19, %cst_14 {dimension_numbers = #tpu.dot_dimension_numbers<[1], [0], [0], [1], [0, 0, 1, 1], [], []>} : vector<32x32xf32>, vector<32x256xf32>, vector<32x256xf32> -> vector<32x256xf32>
      %27 = arith.addf %26, %1 : vector<32x256xf32>
      %28 = math.tanh %27 : vector<32x256xf32>
      %c1_i32_15 = arith.constant 1 : i32
      %29 = arith.subi %25, %c1_i32_15 : i32
      %30 = arith.index_cast %29 : i32 to index
      %31 = memref.load %arg3[%30] : memref<7xf32, #tpu.memory_space<smem>>
      %32 = vector.broadcast %31 : f32 to vector<32x256xf32>
      %33 = arith.mulf %32, %28 : vector<32x256xf32>
      %34 = arith.addf %19, %33 : vector<32x256xf32>
      %c0_16 = arith.constant 0 : index
      %35 = arith.index_cast %c1_i32_12 : i32 to index
      %c0_17 = arith.constant 0 : index
      %c0_18 = arith.constant 0 : index
      %36 = vector.load %arg7[%c0_16, %35, %c0_17, %c0_18] : memref<1x8x32x256xf32, #tpu.memory_space<vmem>>, vector<1x1x32x256xf32>
      %37 = vector.shape_cast %36 : vector<1x1x32x256xf32> to vector<32x256xf32>
      %38 = vector.shape_cast %34 : vector<32x256xf32> to vector<1x1x32x256xf32>
      tpu.vector_store %arg7[%c0_16, %35, %c0_17, %c0_18], %38 {strides = array<i32>} : memref<1x8x32x256xf32, #tpu.memory_space<vmem>>, vector<1x1x32x256xf32>,
      %c2_i32 = arith.constant 2 : i32
      %c8_i32_19 = arith.constant 8 : i32
      %39 = arith.muli %arg2, %c8_i32_19 : i32
      %40 = arith.addi %39, %c2_i32 : i32
      %cst_20 = arith.constant dense<0.000000e+00> : vector<32x256xf32>
      %41 = tpu.matmul %0, %34, %cst_20 {dimension_numbers = #tpu.dot_dimension_numbers<[1], [0], [0], [1], [0, 0, 1, 1], [], []>} : vector<32x32xf32>, vector<32x256xf32>, vector<32x256xf32> -> vector<32x256xf32>
      %42 = arith.addf %41, %1 : vector<32x256xf32>
      %43 = math.tanh %42 : vector<32x256xf32>
      %c1_i32_21 = arith.constant 1 : i32
      %44 = arith.subi %40, %c1_i32_21 : i32
      %45 = arith.index_cast %44 : i32 to index
      %46 = memref.load %arg3[%45] : memref<7xf32, #tpu.memory_space<smem>>
      %47 = vector.broadcast %46 : f32 to vector<32x256xf32>
      %48 = arith.mulf %47, %43 : vector<32x256xf32>
      %49 = arith.addf %34, %48 : vector<32x256xf32>
      %c0_22 = arith.constant 0 : index
      %50 = arith.index_cast %c2_i32 : i32 to index
      %c0_23 = arith.constant 0 : index
      %c0_24 = arith.constant 0 : index
      %51 = vector.load %arg7[%c0_22, %50, %c0_23, %c0_24] : memref<1x8x32x256xf32, #tpu.memory_space<vmem>>, vector<1x1x32x256xf32>
      %52 = vector.shape_cast %51 : vector<1x1x32x256xf32> to vector<32x256xf32>
      %53 = vector.shape_cast %49 : vector<32x256xf32> to vector<1x1x32x256xf32>
      tpu.vector_store %arg7[%c0_22, %50, %c0_23, %c0_24], %53 {strides = array<i32>} : memref<1x8x32x256xf32, #tpu.memory_space<vmem>>, vector<1x1x32x256xf32>,
      %c3_i32 = arith.constant 3 : i32
      %c8_i32_25 = arith.constant 8 : i32
      %54 = arith.muli %arg2, %c8_i32_25 : i32
      %55 = arith.addi %54, %c3_i32 : i32
      %cst_26 = arith.constant dense<0.000000e+00> : vector<32x256xf32>
      %56 = tpu.matmul %0, %49, %cst_26 {dimension_numbers = #tpu.dot_dimension_numbers<[1], [0], [0], [1], [0, 0, 1, 1], [], []>} : vector<32x32xf32>, vector<32x256xf32>, vector<32x256xf32> -> vector<32x256xf32>
      %57 = arith.addf %56, %1 : vector<32x256xf32>
      %58 = math.tanh %57 : vector<32x256xf32>
      %c1_i32_27 = arith.constant 1 : i32
      %59 = arith.subi %55, %c1_i32_27 : i32
      %60 = arith.index_cast %59 : i32 to index
      %61 = memref.load %arg3[%60] : memref<7xf32, #tpu.memory_space<smem>>
      %62 = vector.broadcast %61 : f32 to vector<32x256xf32>
      %63 = arith.mulf %62, %58 : vector<32x256xf32>
      %64 = arith.addf %49, %63 : vector<32x256xf32>
      %c0_28 = arith.constant 0 : index
      %65 = arith.index_cast %c3_i32 : i32 to index
      %c0_29 = arith.constant 0 : index
      %c0_30 = arith.constant 0 : index
      %66 = vector.load %arg7[%c0_28, %65, %c0_29, %c0_30] : memref<1x8x32x256xf32, #tpu.memory_space<vmem>>, vector<1x1x32x256xf32>
      %67 = vector.shape_cast %66 : vector<1x1x32x256xf32> to vector<32x256xf32>
      %68 = vector.shape_cast %64 : vector<32x256xf32> to vector<1x1x32x256xf32>
      tpu.vector_store %arg7[%c0_28, %65, %c0_29, %c0_30], %68 {strides = array<i32>} : memref<1x8x32x256xf32, #tpu.memory_space<vmem>>, vector<1x1x32x256xf32>,
      %c4_i32 = arith.constant 4 : i32
      %c8_i32_31 = arith.constant 8 : i32
      %69 = arith.muli %arg2, %c8_i32_31 : i32
      %70 = arith.addi %69, %c4_i32 : i32
      %cst_32 = arith.constant dense<0.000000e+00> : vector<32x256xf32>
      %71 = tpu.matmul %0, %64, %cst_32 {dimension_numbers = #tpu.dot_dimension_numbers<[1], [0], [0], [1], [0, 0, 1, 1], [], []>} : vector<32x32xf32>, vector<32x256xf32>, vector<32x256xf32> -> vector<32x256xf32>
      %72 = arith.addf %71, %1 : vector<32x256xf32>
      %73 = math.tanh %72 : vector<32x256xf32>
      %c1_i32_33 = arith.constant 1 : i32
      %74 = arith.subi %70, %c1_i32_33 : i32
      %75 = arith.index_cast %74 : i32 to index
      %76 = memref.load %arg3[%75] : memref<7xf32, #tpu.memory_space<smem>>
      %77 = vector.broadcast %76 : f32 to vector<32x256xf32>
      %78 = arith.mulf %77, %73 : vector<32x256xf32>
      %79 = arith.addf %64, %78 : vector<32x256xf32>
      %c0_34 = arith.constant 0 : index
      %80 = arith.index_cast %c4_i32 : i32 to index
      %c0_35 = arith.constant 0 : index
      %c0_36 = arith.constant 0 : index
      %81 = vector.load %arg7[%c0_34, %80, %c0_35, %c0_36] : memref<1x8x32x256xf32, #tpu.memory_space<vmem>>, vector<1x1x32x256xf32>
      %82 = vector.shape_cast %81 : vector<1x1x32x256xf32> to vector<32x256xf32>
      %83 = vector.shape_cast %79 : vector<32x256xf32> to vector<1x1x32x256xf32>
      tpu.vector_store %arg7[%c0_34, %80, %c0_35, %c0_36], %83 {strides = array<i32>} : memref<1x8x32x256xf32, #tpu.memory_space<vmem>>, vector<1x1x32x256xf32>,
      %c5_i32 = arith.constant 5 : i32
      %c8_i32_37 = arith.constant 8 : i32
      %84 = arith.muli %arg2, %c8_i32_37 : i32
      %85 = arith.addi %84, %c5_i32 : i32
      %cst_38 = arith.constant dense<0.000000e+00> : vector<32x256xf32>
      %86 = tpu.matmul %0, %79, %cst_38 {dimension_numbers = #tpu.dot_dimension_numbers<[1], [0], [0], [1], [0, 0, 1, 1], [], []>} : vector<32x32xf32>, vector<32x256xf32>, vector<32x256xf32> -> vector<32x256xf32>
      %87 = arith.addf %86, %1 : vector<32x256xf32>
      %88 = math.tanh %87 : vector<32x256xf32>
      %c1_i32_39 = arith.constant 1 : i32
      %89 = arith.subi %85, %c1_i32_39 : i32
      %90 = arith.index_cast %89 : i32 to index
      %91 = memref.load %arg3[%90] : memref<7xf32, #tpu.memory_space<smem>>
      %92 = vector.broadcast %91 : f32 to vector<32x256xf32>
      %93 = arith.mulf %92, %88 : vector<32x256xf32>
      %94 = arith.addf %79, %93 : vector<32x256xf32>
      %c0_40 = arith.constant 0 : index
      %95 = arith.index_cast %c5_i32 : i32 to index
      %c0_41 = arith.constant 0 : index
      %c0_42 = arith.constant 0 : index
      %96 = vector.load %arg7[%c0_40, %95, %c0_41, %c0_42] : memref<1x8x32x256xf32, #tpu.memory_space<vmem>>, vector<1x1x32x256xf32>
      %97 = vector.shape_cast %96 : vector<1x1x32x256xf32> to vector<32x256xf32>
      %98 = vector.shape_cast %94 : vector<32x256xf32> to vector<1x1x32x256xf32>
      tpu.vector_store %arg7[%c0_40, %95, %c0_41, %c0_42], %98 {strides = array<i32>} : memref<1x8x32x256xf32, #tpu.memory_space<vmem>>, vector<1x1x32x256xf32>,
      %c6_i32 = arith.constant 6 : i32
      %c8_i32_43 = arith.constant 8 : i32
      %99 = arith.muli %arg2, %c8_i32_43 : i32
      %100 = arith.addi %99, %c6_i32 : i32
      %cst_44 = arith.constant dense<0.000000e+00> : vector<32x256xf32>
      %101 = tpu.matmul %0, %94, %cst_44 {dimension_numbers = #tpu.dot_dimension_numbers<[1], [0], [0], [1], [0, 0, 1, 1], [], []>} : vector<32x32xf32>, vector<32x256xf32>, vector<32x256xf32> -> vector<32x256xf32>
      %102 = arith.addf %101, %1 : vector<32x256xf32>
      %103 = math.tanh %102 : vector<32x256xf32>
      %c1_i32_45 = arith.constant 1 : i32
      %104 = arith.subi %100, %c1_i32_45 : i32
      %105 = arith.index_cast %104 : i32 to index
      %106 = memref.load %arg3[%105] : memref<7xf32, #tpu.memory_space<smem>>
      %107 = vector.broadcast %106 : f32 to vector<32x256xf32>
      %108 = arith.mulf %107, %103 : vector<32x256xf32>
      %109 = arith.addf %94, %108 : vector<32x256xf32>
      %c0_46 = arith.constant 0 : index
      %110 = arith.index_cast %c6_i32 : i32 to index
      %c0_47 = arith.constant 0 : index
      %c0_48 = arith.constant 0 : index
      %111 = vector.load %arg7[%c0_46, %110, %c0_47, %c0_48] : memref<1x8x32x256xf32, #tpu.memory_space<vmem>>, vector<1x1x32x256xf32>
      %112 = vector.shape_cast %111 : vector<1x1x32x256xf32> to vector<32x256xf32>
      %113 = vector.shape_cast %109 : vector<32x256xf32> to vector<1x1x32x256xf32>
      tpu.vector_store %arg7[%c0_46, %110, %c0_47, %c0_48], %113 {strides = array<i32>} : memref<1x8x32x256xf32, #tpu.memory_space<vmem>>, vector<1x1x32x256xf32>,
      %c7_i32 = arith.constant 7 : i32
      %c8_i32_49 = arith.constant 8 : i32
      %114 = arith.muli %arg2, %c8_i32_49 : i32
      %115 = arith.addi %114, %c7_i32 : i32
      %cst_50 = arith.constant dense<0.000000e+00> : vector<32x256xf32>
      %116 = tpu.matmul %0, %109, %cst_50 {dimension_numbers = #tpu.dot_dimension_numbers<[1], [0], [0], [1], [0, 0, 1, 1], [], []>} : vector<32x32xf32>, vector<32x256xf32>, vector<32x256xf32> -> vector<32x256xf32>
      %117 = arith.addf %116, %1 : vector<32x256xf32>
      %118 = math.tanh %117 : vector<32x256xf32>
      %c1_i32_51 = arith.constant 1 : i32
      %119 = arith.subi %115, %c1_i32_51 : i32
      %120 = arith.index_cast %119 : i32 to index
      %121 = memref.load %arg3[%120] : memref<7xf32, #tpu.memory_space<smem>>
      %122 = vector.broadcast %121 : f32 to vector<32x256xf32>
      %123 = arith.mulf %122, %118 : vector<32x256xf32>
      %124 = arith.addf %109, %123 : vector<32x256xf32>
      %c0_52 = arith.constant 0 : index
      %125 = arith.index_cast %c7_i32 : i32 to index
      %c0_53 = arith.constant 0 : index
      %c0_54 = arith.constant 0 : index
      %126 = vector.load %arg7[%c0_52, %125, %c0_53, %c0_54] : memref<1x8x32x256xf32, #tpu.memory_space<vmem>>, vector<1x1x32x256xf32>
      %127 = vector.shape_cast %126 : vector<1x1x32x256xf32> to vector<32x256xf32>
      %128 = vector.shape_cast %124 : vector<32x256xf32> to vector<1x1x32x256xf32>
      tpu.vector_store %arg7[%c0_52, %125, %c0_53, %c0_54], %128 {strides = array<i32>} : memref<1x8x32x256xf32, #tpu.memory_space<vmem>>, vector<1x1x32x256xf32>,
      %c8_i32_55 = arith.constant 8 : i32
      %c0_56 = arith.constant 0 : index
      %c0_57 = arith.constant 0 : index
      %129 = vector.load %arg8[%c0_56, %c0_57] : memref<32x256xf32, #tpu.memory_space<vmem>>, vector<32x256xf32>
      tpu.vector_store %arg8[%c0_56, %c0_57], %124 {strides = array<i32>} : memref<32x256xf32, #tpu.memory_space<vmem>>, vector<32x256xf32>,
    } else {
    }
    return
  }
  func.func @transform_0(%arg0: i32, %arg1: i32, %arg2: i32, %arg3: memref<7xf32, #tpu.memory_space<smem>>) -> (i32, i32, i32) {
    %c0_i32 = arith.constant 0 : i32
    %c0_i32_0 = arith.constant 0 : i32
    return %arg0, %c0_i32, %arg1 : i32, i32, i32
  }
  func.func @transform_1(%arg0: i32, %arg1: i32, %arg2: i32, %arg3: memref<7xf32, #tpu.memory_space<smem>>) -> (i32, i32) {
    %c0_i32 = arith.constant 0 : i32
    %c0_i32_0 = arith.constant 0 : i32
    %c0_i32_1 = arith.constant 0 : i32
    return %c0_i32, %c0_i32_0 : i32, i32
  }
  func.func @transform_2(%arg0: i32, %arg1: i32, %arg2: i32, %arg3: memref<7xf32, #tpu.memory_space<smem>>) -> (i32, i32) {
    %c0_i32 = arith.constant 0 : i32
    %c0_i32_0 = arith.constant 0 : i32
    %c0_i32_1 = arith.constant 0 : i32
    return %c0_i32, %c0_i32_0 : i32, i32
  }
  func.func @transform_3(%arg0: i32, %arg1: i32, %arg2: i32, %arg3: memref<7xf32, #tpu.memory_space<smem>>) -> (i32, i32, i32, i32) {
    %c0_i32 = arith.constant 0 : i32
    %c0_i32_0 = arith.constant 0 : i32
    return %arg0, %arg2, %c0_i32, %arg1 : i32, i32, i32, i32
  }
}

</mosaic_0001>

<llo_original>
// kernel: tpu_custom_call.1
$region0: #{tpu_custom_call.1}
  #allocation0 [shape = 'u32[]', space=smem, size = 0x4, offset = 0x4, fixed_abs, tag = 'smem constant byte address 0x4 - core index']
  #allocation1 [shape = 'u32[144,128]{1,0:T(1,128)}', space=vmem, size = 0x12000, scoped, tag = 'internal scratch']
  #allocation2 [shape = 'f32[32,256]{1,0:T(8,128)}', space=vmem, size = 0x8000, scoped, tag = 'scratch operand']
  #allocation3 [shape = 's32[1]{0}', space=sflag, size = 0x4, scoped, tag = 'scoped memory for tpu_custom_call.1']
  #allocation4 [shape = 'u8[512]{0}', space=smem, size = 0x200, scoped, tag = 'prefetched SMEM operand 0']
  %s0 = inlined_call_operand.hbm [shape: f32[7], index: 0, kind: input, shape index: {}]
  %s1 = inlined_call_operand.hbm [shape: f32[2,32,256], index: 1, kind: input, shape index: {}]
  %s2 = inlined_call_operand.hbm [shape: f32[32,32], index: 2, kind: input, shape index: {}]
  %s3 = inlined_call_operand.hbm [shape: f32[32,256], index: 3, kind: input, shape index: {}]
  %s4 = inlined_call_operand.hbm [shape: f32[2,8,32,256], index: 4, kind: output, shape index: {}]
  %s5 = sld [smem:[#allocation0]]
  $region65: #{tpu_custom_call.1} parent=0
    _
  %s7 = ssub.s32 1, %s5
  %s8 = scalar_select 0, %s7, %s5
  %10 = dma.hbm_to_smem %s0, 16, [#allocation4], [#allocation3]
  %11 = dma.done [#allocation3], 16
  %12 = sfence
  $region1: #{tpu_custom_call.1} parent=0
    #allocation5 [shape = 'u8[65536]{0}', space=vmem, size = 0x10000, scoped, tag = 'input window, operand 1']
    #allocation6 [shape = 's32[2]{0}', space=sflag, size = 0x8, scoped, tag = 'scoped memory for tpu_custom_call.1']
    #allocation7 [shape = 's32[2]{0}', space=sflag, size = 0x8, scoped, tag = 'scoped memory for tpu_custom_call.1']
    #allocation8 [shape = 'u8[16384]{0}', space=vmem, size = 0x4000, scoped, tag = 'input window, operand 2, single buffered']
    #allocation9 [shape = 's32[1]{0}', space=sflag, size = 0x4, scoped, tag = 'scoped memory for tpu_custom_call.1']
    #allocation10 [shape = 'u8[32768]{0}', space=vmem, size = 0x8000, scoped, tag = 'input window, operand 3, single buffered']
    #allocation11 [shape = 'u8[524288]{0}', space=vmem, size = 0x80000, scoped, tag = 'output window, operand 0']
    %13 = vsyncpa [#allocation6], 0
    %s14 = scalar_lea.sflag [#allocation6], 1
    %15 = vsyncpa %s14, 0
    %16 = vsyncpa [#allocation9], 0
    %17 = vsyncpa [#allocation7], 0
    %s18 = scalar_lea.sflag [#allocation7], 1
    %19 = vsyncpa %s18, 0
    loop: start=0, step=1, limit=4
    $region2: #{tpu_custom_call.1} parent=1 // loop_pre_header
      _
    $region3: #{tpu_custom_call.1} parent=1 // loop_header
      %s21 = sphi 0, %s25
      %p22 = scmp.ge.s32.totalorder %s21, 4
      %s28 = sphi 0, %s47
      %s29 = sphi 0, %s43
      %s30 = sphi 0, %s39
      %s31 = sphi 0, %s28
      %s32 = sphi 0, %s29
      %s33 = sphi 0, %s30
      %s34 = sphi 0, %s31
      %s35 = sphi 0, %s32
      %s36 = sphi 0, %s33
      %s52 = sphi 0, %s54
      %s55 = sphi 0, %s52
      %s56 = sphi 0, %s55
      %s72 = sphi 0, %s56
      %s76 = sphi 0, %s76
      %s78 = sphi 0, %s76
      %s79 = sphi 0, %s78
      %s93 = sphi 0, %s79
      %s97 = sphi 0, %s97
      %s99 = sphi 0, %s97
      %s100 = sphi 0, %s99
      %s114 = sphi 0, %s100
      %s124 = sphi 0, %s126
      %s127 = sphi 0, %s124
      %s128 = sphi 0, %s127
      %s144 = sphi 0, %s128
    $region4: #{tpu_custom_call.1} parent=1 // loop_header_branch
      %24 = sbr.rel (%p22) target = $region8
    $region5: #{tpu_custom_call.1} parent=1 // loop_body
      %s26 = ssub.s32 %s21, 1
      %s27 = ssub.s32 %s21, 2
      %s37 = sadd.s32 1, %s30
      %p38 = scmp.ge.s32.totalorder %s37, 1
      %s39 = scalar_select %p38, 0, %s37
      %s40 = sadd.s32 1, %s29
      %s41 = scalar_select %p38, %s40, %s29
      %p42 = scmp.ge.s32.totalorder %s41, 1
      %s43 = scalar_select %p42, 0, %s41
      %s44 = sadd.s32 1, %s28
      %s45 = scalar_select %p42, %s44, %s28
      %p46 = scmp.ge.s32.totalorder %s45, 2
      %s47 = scalar_select %p46, 0, %s45
      %s48 = ssub.s32 %s28, %s47
      %s49 = ssub.s32 %s29, %s43
      %s50 = sor.u32 %s48, %s49
      %p51 = scmp.eq.s32.totalorder %s50, 0
      %s53 = sadd.s32 %s52, 1
      %s54 = scalar_select %p51, %s52, %s53
      %p57 = pneg %p51
      %p58 = scmp.eq.s32.totalorder %s21, 1
      %p59 = por %p57, %p58
      %p60 = scmp.ne.s32.totalorder %s52, %s55
      %p61 = scmp.eq.s32.totalorder %s21, 0
      %p62 = por %p60, %p61
      %p63 = scmp.ne.s32.totalorder %s52, %s55
      %p64 = scmp.eq.s32.totalorder %s26, 1
      %p65 = por %p63, %p64
      %p66 = scmp.ne.s32.totalorder %s55, %s56
      %p67 = scmp.eq.s32.totalorder %s26, 0
      %p68 = por %p66, %p67
      %p69 = scmp.ne.s32.totalorder %s55, %s56
      %p70 = scmp.eq.s32.totalorder %s27, 1
      %p71 = por %p69, %p70
      %p73 = scmp.ne.s32.totalorder %s56, %s72
      %p74 = scmp.eq.s32.totalorder %s27, 0
      %p75 = por %p73, %p74
      %s77 = sadd.s32 %s76, 1
      %p80 = scmp.eq.s32.totalorder %s21, 1
      %p81 = scmp.ne.s32.totalorder %s76, %s78
      %p82 = scmp.eq.s32.totalorder %s21, 0
      %p83 = por %p81, %p82
      %p84 = scmp.ne.s32.totalorder %s76, %s78
      %p85 = scmp.eq.s32.totalorder %s26, 1
      %p86 = por %p84, %p85
      %p87 = scmp.ne.s32.totalorder %s78, %s79
      %p88 = scmp.eq.s32.totalorder %s26, 0
      %p89 = por %p87, %p88
      %p90 = scmp.ne.s32.totalorder %s78, %s79
      %p91 = scmp.eq.s32.totalorder %s27, 1
      %p92 = por %p90, %p91
      %p94 = scmp.ne.s32.totalorder %s79, %s93
      %p95 = scmp.eq.s32.totalorder %s27, 0
      %p96 = por %p94, %p95
      %s98 = sadd.s32 %s97, 1
      %p101 = scmp.eq.s32.totalorder %s21, 1
      %p102 = scmp.ne.s32.totalorder %s97, %s99
      %p103 = scmp.eq.s32.totalorder %s21, 0
      %p104 = por %p102, %p103
      %p105 = scmp.ne.s32.totalorder %s97, %s99
      %p106 = scmp.eq.s32.totalorder %s26, 1
      %p107 = por %p105, %p106
      %p108 = scmp.ne.s32.totalorder %s99, %s100
      %p109 = scmp.eq.s32.totalorder %s26, 0
      %p110 = por %p108, %p109
      %p111 = scmp.ne.s32.totalorder %s99, %s100
      %p112 = scmp.eq.s32.totalorder %s27, 1
      %p113 = por %p111, %p112
      %p115 = scmp.ne.s32.totalorder %s100, %s114
      %p116 = scmp.eq.s32.totalorder %s27, 0
      %p117 = por %p115, %p116
      %s118 = ssub.s32 %s28, %s47
      %s119 = ssub.s32 %s30, %s39
      %s120 = sor.u32 %s118, %s119
      %s121 = ssub.s32 %s29, %s43
      %s122 = sor.u32 %s120, %s121
      %p123 = scmp.eq.s32.totalorder %s122, 0
      %s125 = sadd.s32 %s124, 1
      %s126 = scalar_select %p123, %s124, %s125
      %p129 = pneg %p123
      %p130 = scmp.eq.s32.totalorder %s21, 1
      %p131 = por %p129, %p130
      %p132 = scmp.ne.s32.totalorder %s124, %s127
      %p133 = scmp.eq.s32.totalorder %s21, 0
      %p134 = por %p132, %p133
      %p135 = scmp.ne.s32.totalorder %s124, %s127
      %p136 = scmp.eq.s32.totalorder %s26, 1
      %p137 = por %p135, %p136
      %p138 = scmp.ne.s32.totalorder %s127, %s128
      %p139 = scmp.eq.s32.totalorder %s26, 0
      %p140 = por %p138, %p139
      %p141 = scmp.ne.s32.totalorder %s127, %s128
      %p142 = scmp.eq.s32.totalorder %s27, 1
      %p143 = por %p141, %p142
      %p145 = scmp.ne.s32.totalorder %s128, %s144
      %p146 = scmp.eq.s32.totalorder %s27, 0
      %p147 = por %p145, %p146
      %p148 = scmp.le.s32.totalorder 1, %s21
      %p149 = scmp.lt.s32.totalorder %s21, 3
      %p150 = pnand %p148, %p149
      %p151 = pneg %p150
      // Predicated region
      $region9: #{tpu_custom_call.1} parent=5 // pred_check
        _
      $region10: #{tpu_custom_call.1} parent=5 // pred_check_branch
        %153 = sbr.rel (%p150) target = $region12
      $region11: #{tpu_custom_call.1} parent=5 // pred_region
        %s154 = ssub.s32 %s21, 1
        // Predicated region
        $region13: #{tpu_custom_call.1} parent=11 // pred_check
          %p155 = pneg %p89
        $region14: #{tpu_custom_call.1} parent=11 // pred_check_branch
          %157 = sbr.rel (%p155) target = $region16
        $region15: #{tpu_custom_call.1} parent=11 // pred_region
          %s159 = ssub.s32 512, 512
          %160 = vsyncadd [#allocation9], %s159
          %s161 = sshll.u32 [#allocation8], 4
          %s162 = int_to_ptr.vmem [resolvable:$true] %s161
          %167 = dma.hbm_to_vmem [thread:$0]  %s2, 512, %s162, [#allocation9], 128, 128, 8
        $region16: #{tpu_custom_call.1} parent=11 // pred_fallthru
          _
        // Predicated region
        $region17: #{tpu_custom_call.1} parent=11 // pred_check
          %p168 = pneg %p110
        $region18: #{tpu_custom_call.1} parent=11 // pred_check_branch
          %170 = sbr.rel (%p168) target = $region20
        $region19: #{tpu_custom_call.1} parent=11 // pred_region
          %s172 = ssub.s32 1024, 1024
          %173 = vsyncadd [#allocation9], %s172
          %s174 = sshll.u32 [#allocation10], 4
          %s175 = int_to_ptr.vmem [resolvable:$true] %s174
          %180 = dma.hbm_to_vmem [thread:$0]  %s3, 1024, %s175, [#allocation9], 256, 256, 16
        $region20: #{tpu_custom_call.1} parent=11 // pred_fallthru
          _
      $region12: #{tpu_custom_call.1} parent=5 // pred_fallthru
        _
      %p181 = scmp.lt.s32.totalorder %s21, 2
      // Predicated region
      $region21: #{tpu_custom_call.1} parent=5 // pred_check
        %p182 = pneg %p181
      $region22: #{tpu_custom_call.1} parent=5 // pred_check_branch
        %184 = sbr.rel (%p182) target = $region24
      $region23: #{tpu_custom_call.1} parent=5 // pred_region
        // Predicated region
        $region25: #{tpu_custom_call.1} parent=23 // pred_check
          %p185 = pneg %p62
        $region26: #{tpu_custom_call.1} parent=23 // pred_check_branch
          %187 = sbr.rel (%p185) target = $region28
        $region27: #{tpu_custom_call.1} parent=23 // pred_region
          %s188 = sand.u32 %s52, 1
          %s189 = scalar_lea.sflag [#allocation6], %s188
          %s190 = sand.u32 %s52, 1
          %s191 = smul.addr %s190, 64
          %s192 = scalar_lea.vmem [#allocation5], %s191
          %s193 = smul.u32 2, %s29
          %s195 = ssub.s32 1024, 1024
          %196 = vsyncadd %s189, %s195
          %s197 = smul.addr %s28, 8
          %s198 = sadd.s32 %s193, %s197
          %s199 = smul.addr %s198, 128
          %s200 = scalar_lea.hbm %s1, %s199
          %s201 = sshll.u32 %s192, 4
          %s202 = int_to_ptr.vmem [resolvable:$true] %s201
          %207 = dma.hbm_to_vmem [thread:$0]  %s200, 1024, %s202, %s189, 256, 256, 16
        $region28: #{tpu_custom_call.1} parent=23 // pred_fallthru
          _
      $region24: #{tpu_custom_call.1} parent=5 // pred_fallthru
        _
      %p208 = scmp.le.s32.totalorder 1, %s21
      %p209 = scmp.lt.s32.totalorder %s21, 3
      %p210 = pnand %p208, %p209
      %p211 = pneg %p210
      // Predicated region
      $region29: #{tpu_custom_call.1} parent=5 // pred_check
        _
      $region30: #{tpu_custom_call.1} parent=5 // pred_check_branch
        %213 = sbr.rel (%p210) target = $region32
      $region31: #{tpu_custom_call.1} parent=5 // pred_region
        %s214 = ssub.s32 %s21, 1
        %s215 = sand.u32 %s55, 1
        %s216 = scalar_lea.sflag [#allocation6], %s215
        %s217 = sand.u32 %s55, 1
        %s218 = smul.addr %s217, 64
        %s219 = scalar_lea.vmem [#allocation5], %s218
        // Predicated region
        $region33: #{tpu_custom_call.1} parent=31 // pred_check
          %p220 = pneg %p68
        $region34: #{tpu_custom_call.1} parent=31 // pred_check_branch
          %222 = sbr.rel (%p220) target = $region36
        $region35: #{tpu_custom_call.1} parent=31 // pred_region
          %223 = dma.done %s216, 1024
        $region36: #{tpu_custom_call.1} parent=31 // pred_fallthru
          _
        // Predicated region
        $region37: #{tpu_custom_call.1} parent=31 // pred_check
          %p224 = pneg %p89
        $region38: #{tpu_custom_call.1} parent=31 // pred_check_branch
          %226 = sbr.rel (%p224) target = $region40
        $region39: #{tpu_custom_call.1} parent=31 // pred_region
          %227 = dma.done [#allocation9], 512
        $region40: #{tpu_custom_call.1} parent=31 // pred_fallthru
          _
        // Predicated region
        $region41: #{tpu_custom_call.1} parent=31 // pred_check
          %p228 = pneg %p110
        $region42: #{tpu_custom_call.1} parent=31 // pred_check_branch
          %230 = sbr.rel (%p228) target = $region44
        $region43: #{tpu_custom_call.1} parent=31 // pred_region
          %231 = dma.done [#allocation9], 1024
        $region44: #{tpu_custom_call.1} parent=31 // pred_fallthru
          _
        %s232 = sand.u32 %s55, 1
        %s233 = scalar_lea.sflag [#allocation6], %s232
        %s234 = sand.u32 %s55, 1
        %s235 = smul.addr %s234, 64
        %s236 = scalar_lea.vmem [#allocation5], %s235
        %p237 = pneg %p68
        %p238 = pneg %p65
        %p239 = pneg %p89
        %p240 = pneg %p86
        %p241 = pneg %p110
        %p242 = pneg %p107
        %p243 = pneg %p140
        %p244 = pneg %p137
        %s245 = sand.u32 %s127, 1
        %s246 = scalar_lea.sflag [#allocation7], %s245
        %s247 = sand.u32 %s127, 1
        %s248 = smul.addr %s247, 512
        %s249 = scalar_lea.vmem [#allocation11], %s248
        %s250 = smul.u32 2, %s32
        %s251 = smul.u32 8, %s33
        %s252 = smul.u32 2, %s32
        %v253 = vld [vmem:[#allocation8] sm:$0xff]
        %v254 = vld [vmem:[#allocation8 + $0x8] sm:$0xff]
        %v255 = vld [vmem:[#allocation8 + $0x10] sm:$0xff]
        %v256 = vld [vmem:[#allocation8 + $0x18] sm:$0xff]
        %v257 = vld [vmem:[#allocation10] sm:$0xff]
        %v258 = vld [vmem:[#allocation10 + $0x8] sm:$0xff]
        %v259 = vld [vmem:[#allocation10 + $0x10] sm:$0xff]
        %v260 = vld [vmem:[#allocation10 + $0x18] sm:$0xff]
        %v261 = vld [vmem:[#allocation10 + $0x20] sm:$0xff]
        %v262 = vld [vmem:[#allocation10 + $0x28] sm:$0xff]
        %v263 = vld [vmem:[#allocation10 + $0x30] sm:$0xff]
        %v264 = vld [vmem:[#allocation10 + $0x38] sm:$0xff]
        %p265 = scmp.eq.s32.totalorder %s33, 0
        // Predicated region
        $region45: #{tpu_custom_call.1} parent=31 // pred_check
          %p266 = pneg %p265
        $region46: #{tpu_custom_call.1} parent=31 // pred_check_branch
          %268 = sbr.rel (%p266) target = $region48
        $region47: #{tpu_custom_call.1} parent=31 // pred_region
          %v269 = vld [vmem:[%s219] sm:$0xff]
          %v270 = vld [vmem:[%s219 + $0x8] sm:$0xff]
          %v271 = vld [vmem:[%s219 + $0x10] sm:$0xff]
          %v272 = vld [vmem:[%s219 + $0x18] sm:$0xff]
          %v273 = vld [vmem:[%s219 + $0x20] sm:$0xff]
          %v274 = vld [vmem:[%s219 + $0x28] sm:$0xff]
          %v275 = vld [vmem:[%s219 + $0x30] sm:$0xff]
          %v276 = vld [vmem:[%s219 + $0x38] sm:$0xff]
          %277 = vst [vmem:[%s249] sm:$0xff] %v269
          %278 = vst [vmem:[%s249 + $0x8] sm:$0xff] %v270
          %279 = vst [vmem:[%s249 + $0x10] sm:$0xff] %v271
          %280 = vst [vmem:[%s249 + $0x18] sm:$0xff] %v272
          %281 = vst [vmem:[%s249 + $0x20] sm:$0xff] %v273
          %282 = vst [vmem:[%s249 + $0x28] sm:$0xff] %v274
          %283 = vst [vmem:[%s249 + $0x30] sm:$0xff] %v275
          %284 = vst [vmem:[%s249 + $0x38] sm:$0xff] %v276
          %s285 = smul.u32 %s33, 8
          %vm286 = vcmask 261120
          %v288 = vsel %vm286, %v253, 0
          %v291 = vsel %vm286, %v254, 0
          %v294 = vsel %vm286, %v255, 0
          %v297 = vsel %vm286, %v256, 0
          %299 = vmatprep.subr.mxu0 0.0
          %300 = vmatpush1.msra.mxu0 0.0
          %301 = vmatprep.subr.mxu0 0.0
          %302 = vmatpush1.msra.mxu0 0.0
          %303 = vmatprep.subr.mxu0 0.0
          %304 = vmatpush1.msra.mxu0 0.0
          %305 = vmatprep.subr.mxu0 0.0
          %306 = vmatpush1.msra.mxu0 0.0
          %307 = vmatprep.subr.mxu0 0.0
          %308 = vmatpush1.msra.mxu0 0.0
          %309 = vmatprep.subr.mxu0 0.0
          %310 = vmatpush1.msra.mxu0 0.0
          %311 = vmatprep.subr.mxu0 0.0
          %312 = vmatpush1.msra.mxu0 0.0
          %313 = vmatprep.subr.mxu0 0.0
          %314 = vmatpush1.msra.mxu0 0.0
          %315 = vmatprep.subr.mxu0 0.0
          %316 = vmatpush1.msra.mxu0 0.0
          %317 = vmatprep.subr.mxu0 0.0
          %318 = vmatpush1.msra.mxu0 0.0
          %319 = vmatprep.subr.mxu0 0.0
          %320 = vmatpush1.msra.mxu0 0.0
          %321 = vmatprep.subr.mxu0 0.0
          %322 = vmatpush1.msra.mxu0 0.0
          %323 = vmatprep.subr.mxu0 %v276
          %324 = vmatpush1.msra.mxu0 %v275
          %325 = vmatprep.subr.mxu0 %v274
          %326 = vmatpush1.msra.mxu0 %v273
          %327 = vmatprep.subr.mxu0 %v272
          %328 = vmatpush1.msra.mxu0 %v271
          %329 = vmatprep.subr.mxu0 %v270
          %330 = vmatpush1.msra.mxu0 %v269
          %331 = vmatprep.subr.mxu0 0.0
          %332 = vmatpush2.msra.mxu0 0.0
          %333 = vmatprep.subr.mxu0 0.0
          %334 = vmatpush2.msra.mxu0 0.0
          %335 = vmatprep.subr.mxu0 0.0
          %336 = vmatpush2.msra.mxu0 0.0
          %337 = vmatprep.subr.mxu0 0.0
          %338 = vmatpush2.msra.mxu0 0.0
          %339 = vmatprep.subr.mxu0 0.0
          %340 = vmatpush2.msra.mxu0 0.0
          %341 = vmatprep.subr.mxu0 0.0
          %342 = vmatpush2.msra.mxu0 0.0
          %343 = vmatprep.subr.mxu0 0.0
          %344 = vmatpush2.msra.mxu0 0.0
          %345 = vmatprep.subr.mxu0 0.0
          %346 = vmatpush2.msra.mxu0 0.0
          %347 = vmatprep.subr.mxu0 0.0
          %348 = vmatpush2.msra.mxu0 0.0
          %349 = vmatprep.subr.mxu0 0.0
          %350 = vmatpush2.msra.mxu0 0.0
          %351 = vmatprep.subr.mxu0 0.0
          %352 = vmatpush2.msra.mxu0 0.0
          %353 = vmatprep.subr.mxu0 0.0
          %354 = vmatpush2.msra.mxu0 0.0
          %355 = vmatprep.subr.mxu0 0.0
          %356 = vmatpush2.msra.mxu0 0.0
          %357 = vmatprep.subr.mxu0 0.0
          %358 = vmatpush2.msra.mxu0 0.0
          %359 = vmatprep.subr.mxu0 0.0
          %360 = vmatpush2.msra.mxu0 0.0
          %361 = vmatprep.subr.mxu0 0.0
          %362 = vmatpush2.msra.mxu0 0.0
          %363 = vmatprep.mubr.f32.mxu0 0.0
          %364 = vmatmul.mubr.f32.gmra.mxu0 %v288
          %v365 = vpop.f32.mrf.mxu0
          %v366 = vadd.f32 %v257, %v365
          %v367 = vpop.f32.mrf.mxu0
          %v368 = vadd.f32 %v258, %v367
          %369 = vmatprep.mubr.f32.mxu0 0.0
          %370 = vmatmul.mubr.f32.gmra.mxu0 %v291
          %v371 = vpop.f32.mrf.mxu0
          %v372 = vadd.f32 %v259, %v371
          %v373 = vpop.f32.mrf.mxu0
          %v374 = vadd.f32 %v260, %v373
          %375 = vmatprep.mubr.f32.mxu0 0.0
          %376 = vmatmul.mubr.f32.gmra.mxu0 %v294
          %v377 = vpop.f32.mrf.mxu0
          %v378 = vadd.f32 %v261, %v377
          %v379 = vpop.f32.mrf.mxu0
          %v380 = vadd.f32 %v262, %v379
          %381 = vmatprep.mubr.f32.mxu0 0.0
          %382 = vmatmul.mubr.f32.gmra.mxu0 %v297
          %v383 = vpop.f32.mrf.mxu0
          %v384 = vadd.f32 %v263, %v383
          %v385 = vpop.f32.mrf.mxu0
          %v386 = vadd.f32 %v264, %v385
          %387 = vdwg.mxu0
          %v388 = vtanh.pop %v366
          %v389 = vtanh.pop %v368
          %v390 = vtanh.pop %v372
          %v391 = vtanh.pop %v374
          %v392 = vtanh.pop %v378
          %v393 = vtanh.pop %v380
          %v394 = vtanh.pop %v384
          %v395 = vtanh.pop %v386
          %s396 = sld [smem:[#allocation4 + %s285]]
          %v397 = vstv %s396
          %v398 = vmul.f32 %v397, %v388
          %v399 = vmul.f32 %v397, %v389
          %v400 = vmul.f32 %v397, %v390
          %v401 = vmul.f32 %v397, %v391
          %v402 = vmul.f32 %v397, %v392
          %v403 = vmul.f32 %v397, %v393
          %v404 = vmul.f32 %v397, %v394
          %v405 = vmul.f32 %v397, %v395
          %v406 = vadd.f32 %v269, %v398
          %v407 = vadd.f32 %v270, %v399
          %v408 = vadd.f32 %v271, %v400
          %v409 = vadd.f32 %v272, %v401
          %v410 = vadd.f32 %v273, %v402
          %v411 = vadd.f32 %v274, %v403
          %v412 = vadd.f32 %v275, %v404
          %v413 = vadd.f32 %v276, %v405
          %s414 = scalar_lea.vmem %s249, 64 [#allocation11]
          %415 = vst [vmem:[%s414] sm:$0xff] %v406
          %416 = vst [vmem:[%s414 + $0x8] sm:$0xff] %v407
          %417 = vst [vmem:[%s414 + $0x10] sm:$0xff] %v408
          %418 = vst [vmem:[%s414 + $0x18] sm:$0xff] %v409
          %419 = vst [vmem:[%s414 + $0x20] sm:$0xff] %v410
          %420 = vst [vmem:[%s414 + $0x28] sm:$0xff] %v411
          %421 = vst [vmem:[%s414 + $0x30] sm:$0xff] %v412
          %422 = vst [vmem:[%s414 + $0x38] sm:$0xff] %v413
          %423 = vmatprep.subr.mxu0 0.0
          %424 = vmatpush1.msra.mxu0 0.0
          %425 = vmatprep.subr.mxu0 0.0
          %426 = vmatpush1.msra.mxu0 0.0
          %427 = vmatprep.subr.mxu0 0.0
          %428 = vmatpush1.msra.mxu0 0.0
          %429 = vmatprep.subr.mxu0 0.0
          %430 = vmatpush1.msra.mxu0 0.0
          %431 = vmatprep.subr.mxu0 0.0
          %432 = vmatpush1.msra.mxu0 0.0
          %433 = vmatprep.subr.mxu0 0.0
          %434 = vmatpush1.msra.mxu0 0.0
          %435 = vmatprep.subr.mxu0 0.0
          %436 = vmatpush1.msra.mxu0 0.0
          %437 = vmatprep.subr.mxu0 0.0
          %438 = vmatpush1.msra.mxu0 0.0
          %439 = vmatprep.subr.mxu0 0.0
          %440 = vmatpush1.msra.mxu0 0.0
          %441 = vmatprep.subr.mxu0 0.0
          %442 = vmatpush1.msra.mxu0 0.0
          %443 = vmatprep.subr.mxu0 0.0
          %444 = vmatpush1.msra.mxu0 0.0
          %445 = vmatprep.subr.mxu0 0.0
          %446 = vmatpush1.msra.mxu0 0.0
          %447 = vmatprep.subr.mxu0 %v413
          %448 = vmatpush1.msra.mxu0 %v412
          %449 = vmatprep.subr.mxu0 %v411
          %450 = vmatpush1.msra.mxu0 %v410
          %451 = vmatprep.subr.mxu0 %v409
          %452 = vmatpush1.msra.mxu0 %v408
          %453 = vmatprep.subr.mxu0 %v407
          %454 = vmatpush1.msra.mxu0 %v406
          %455 = vmatprep.subr.mxu0 0.0
          %456 = vmatpush2.msra.mxu0 0.0
          %457 = vmatprep.subr.mxu0 0.0
          %458 = vmatpush2.msra.mxu0 0.0
          %459 = vmatprep.subr.mxu0 0.0
          %460 = vmatpush2.msra.mxu0 0.0
          %461 = vmatprep.subr.mxu0 0.0
          %462 = vmatpush2.msra.mxu0 0.0
          %463 = vmatprep.subr.mxu0 0.0
          %464 = vmatpush2.msra.mxu0 0.0
          %465 = vmatprep.subr.mxu0 0.0
          %466 = vmatpush2.msra.mxu0 0.0
          %467 = vmatprep.subr.mxu0 0.0
          %468 = vmatpush2.msra.mxu0 0.0
          %469 = vmatprep.subr.mxu0 0.0
          %470 = vmatpush2.msra.mxu0 0.0
          %471 = vmatprep.subr.mxu0 0.0
          %472 = vmatpush2.msra.mxu0 0.0
          %473 = vmatprep.subr.mxu0 0.0
          %474 = vmatpush2.msra.mxu0 0.0
          %475 = vmatprep.subr.mxu0 0.0
          %476 = vmatpush2.msra.mxu0 0.0
          %477 = vmatprep.subr.mxu0 0.0
          %478 = vmatpush2.msra.mxu0 0.0
          %479 = vmatprep.subr.mxu0 0.0
          %480 = vmatpush2.msra.mxu0 0.0
          %481 = vmatprep.subr.mxu0 0.0
          %482 = vmatpush2.msra.mxu0 0.0
          %483 = vmatprep.subr.mxu0 0.0
          %484 = vmatpush2.msra.mxu0 0.0
          %485 = vmatprep.subr.mxu0 0.0
          %486 = vmatpush2.msra.mxu0 0.0
          %487 = vmatprep.mubr.f32.mxu0 0.0
          %488 = vmatmul.mubr.f32.gmra.mxu0 %v288
          %v489 = vpop.f32.mrf.mxu0
          %v490 = vadd.f32 %v257, %v489
          %v491 = vpop.f32.mrf.mxu0
          %v492 = vadd.f32 %v258, %v491
          %493 = vmatprep.mubr.f32.mxu0 0.0
          %494 = vmatmul.mubr.f32.gmra.mxu0 %v291
          %v495 = vpop.f32.mrf.mxu0
          %v496 = vadd.f32 %v259, %v495
          %v497 = vpop.f32.mrf.mxu0
          %v498 = vadd.f32 %v260, %v497
          %499 = vmatprep.mubr.f32.mxu0 0.0
          %500 = vmatmul.mubr.f32.gmra.mxu0 %v294
          %v501 = vpop.f32.mrf.mxu0
          %v502 = vadd.f32 %v261, %v501
          %v503 = vpop.f32.mrf.mxu0
          %v504 = vadd.f32 %v262, %v503
          %505 = vmatprep.mubr.f32.mxu0 0.0
          %506 = vmatmul.mubr.f32.gmra.mxu0 %v297
          %v507 = vpop.f32.mrf.mxu0
          %v508 = vadd.f32 %v263, %v507
          %v509 = vpop.f32.mrf.mxu0
          %v510 = vadd.f32 %v264, %v509
          %511 = vdwg.mxu0
          %v512 = vtanh.pop %v490
          %v513 = vtanh.pop %v492
          %v514 = vtanh.pop %v496
          %v515 = vtanh.pop %v498
          %v516 = vtanh.pop %v502
          %v517 = vtanh.pop %v504
          %v518 = vtanh.pop %v508
          %v519 = vtanh.pop %v510
          %s520 = sadd.s32 %s285, 1
          %s521 = sld [smem:[#allocation4 + %s520]]
          %v522 = vstv %s521
          %v523 = vmul.f32 %v522, %v512
          %v524 = vmul.f32 %v522, %v513
          %v525 = vmul.f32 %v522, %v514
          %v526 = vmul.f32 %v522, %v515
          %v527 = vmul.f32 %v522, %v516
          %v528 = vmul.f32 %v522, %v517
          %v529 = vmul.f32 %v522, %v518
          %v530 = vmul.f32 %v522, %v519
          %v531 = vadd.f32 %v406, %v523
          %v532 = vadd.f32 %v407, %v524
          %v533 = vadd.f32 %v408, %v525
          %v534 = vadd.f32 %v409, %v526
          %v535 = vadd.f32 %v410, %v527
          %v536 = vadd.f32 %v411, %v528
          %v537 = vadd.f32 %v412, %v529
          %v538 = vadd.f32 %v413, %v530
          %s539 = scalar_lea.vmem %s249, 128 [#allocation11]
          %540 = vst [vmem:[%s539] sm:$0xff] %v531
          %541 = vst [vmem:[%s539 + $0x8] sm:$0xff] %v532
          %542 = vst [vmem:[%s539 + $0x10] sm:$0xff] %v533
          %543 = vst [vmem:[%s539 + $0x18] sm:$0xff] %v534
          %544 = vst [vmem:[%s539 + $0x20] sm:$0xff] %v535
          %545 = vst [vmem:[%s539 + $0x28] sm:$0xff] %v536
          %546 = vst [vmem:[%s539 + $0x30] sm:$0xff] %v537
          %547 = vst [vmem:[%s539 + $0x38] sm:$0xff] %v538
          %548 = vmatprep.subr.mxu0 0.0
          %549 = vmatpush1.msra.mxu0 0.0
          %550 = vmatprep.subr.mxu0 0.0
          %551 = vmatpush1.msra.mxu0 0.0
          %552 = vmatprep.subr.mxu0 0.0
          %553 = vmatpush1.msra.mxu0 0.0
          %554 = vmatprep.subr.mxu0 0.0
          %555 = vmatpush1.msra.mxu0 0.0
          %556 = vmatprep.subr.mxu0 0.0
          %557 = vmatpush1.msra.mxu0 0.0
          %558 = vmatprep.subr.mxu0 0.0
          %559 = vmatpush1.msra.mxu0 0.0
          %560 = vmatprep.subr.mxu0 0.0
          %561 = vmatpush1.msra.mxu0 0.0
          %562 = vmatprep.subr.mxu0 0.0
          %563 = vmatpush1.msra.mxu0 0.0
          %564 = vmatprep.subr.mxu0 0.0
          %565 = vmatpush1.msra.mxu0 0.0
          %566 = vmatprep.subr.mxu0 0.0
          %567 = vmatpush1.msra.mxu0 0.0
          %568 = vmatprep.subr.mxu0 0.0
          %569 = vmatpush1.msra.mxu0 0.0
          %570 = vmatprep.subr.mxu0 0.0
          %571 = vmatpush1.msra.mxu0 0.0
          %572 = vmatprep.subr.mxu0 %v538
          %573 = vmatpush1.msra.mxu0 %v537
          %574 = vmatprep.subr.mxu0 %v536
          %575 = vmatpush1.msra.mxu0 %v535
          %576 = vmatprep.subr.mxu0 %v534
          %577 = vmatpush1.msra.mxu0 %v533
          %578 = vmatprep.subr.mxu0 %v532
          %579 = vmatpush1.msra.mxu0 %v531
          %580 = vmatprep.subr.mxu0 0.0
          %581 = vmatpush2.msra.mxu0 0.0
          %582 = vmatprep.subr.mxu0 0.0
          %583 = vmatpush2.msra.mxu0 0.0
          %584 = vmatprep.subr.mxu0 0.0
          %585 = vmatpush2.msra.mxu0 0.0
          %586 = vmatprep.subr.mxu0 0.0
          %587 = vmatpush2.msra.mxu0 0.0
          %588 = vmatprep.subr.mxu0 0.0
          %589 = vmatpush2.msra.mxu0 0.0
          %590 = vmatprep.subr.mxu0 0.0
          %591 = vmatpush2.msra.mxu0 0.0
          %592 = vmatprep.subr.mxu0 0.0
          %593 = vmatpush2.msra.mxu0 0.0
          %594 = vmatprep.subr.mxu0 0.0
          %595 = vmatpush2.msra.mxu0 0.0
          %596 = vmatprep.subr.mxu0 0.0
          %597 = vmatpush2.msra.mxu0 0.0
          %598 = vmatprep.subr.mxu0 0.0
          %599 = vmatpush2.msra.mxu0 0.0
          %600 = vmatprep.subr.mxu0 0.0
          %601 = vmatpush2.msra.mxu0 0.0
          %602 = vmatprep.subr.mxu0 0.0
          %603 = vmatpush2.msra.mxu0 0.0
          %604 = vmatprep.subr.mxu0 0.0
          %605 = vmatpush2.msra.mxu0 0.0
          %606 = vmatprep.subr.mxu0 0.0
          %607 = vmatpush2.msra.mxu0 0.0
          %608 = vmatprep.subr.mxu0 0.0
          %609 = vmatpush2.msra.mxu0 0.0
          %610 = vmatprep.subr.mxu0 0.0
          %611 = vmatpush2.msra.mxu0 0.0
          %612 = vmatprep.mubr.f32.mxu0 0.0
          %613 = vmatmul.mubr.f32.gmra.mxu0 %v288
          %v614 = vpop.f32.mrf.mxu0
          %v615 = vadd.f32 %v257, %v614
          %v616 = vpop.f32.mrf.mxu0
          %v617 = vadd.f32 %v258, %v616
          %618 = vmatprep.mubr.f32.mxu0 0.0
          %619 = vmatmul.mubr.f32.gmra.mxu0 %v291
          %v620 = vpop.f32.mrf.mxu0
          %v621 = vadd.f32 %v259, %v620
          %v622 = vpop.f32.mrf.mxu0
          %v623 = vadd.f32 %v260, %v622
          %624 = vmatprep.mubr.f32.mxu0 0.0
          %625 = vmatmul.mubr.f32.gmra.mxu0 %v294
          %v626 = vpop.f32.mrf.mxu0
          %v627 = vadd.f32 %v261, %v626
          %v628 = vpop.f32.mrf.mxu0
          %v629 = vadd.f32 %v262, %v628
          %630 = vmatprep.mubr.f32.mxu0 0.0
          %631 = vmatmul.mubr.f32.gmra.mxu0 %v297
          %v632 = vpop.f32.mrf.mxu0
          %v633 = vadd.f32 %v263, %v632
          %v634 = vpop.f32.mrf.mxu0
          %v635 = vadd.f32 %v264, %v634
          %636 = vdwg.mxu0
          %v637 = vtanh.pop %v615
          %v638 = vtanh.pop %v617
          %v639 = vtanh.pop %v621
          %v640 = vtanh.pop %v623
          %v641 = vtanh.pop %v627
          %v642 = vtanh.pop %v629
          %v643 = vtanh.pop %v633
          %v644 = vtanh.pop %v635
          %s645 = sadd.s32 %s285, 2
          %s646 = sld [smem:[#allocation4 + %s645]]
          %v647 = vstv %s646
          %v648 = vmul.f32 %v647, %v637
          %v649 = vmul.f32 %v647, %v638
          %v650 = vmul.f32 %v647, %v639
          %v651 = vmul.f32 %v647, %v640
          %v652 = vmul.f32 %v647, %v641
          %v653 = vmul.f32 %v647, %v642
          %v654 = vmul.f32 %v647, %v643
          %v655 = vmul.f32 %v647, %v644
          %v656 = vadd.f32 %v531, %v648
          %v657 = vadd.f32 %v532, %v649
          %v658 = vadd.f32 %v533, %v650
          %v659 = vadd.f32 %v534, %v651
          %v660 = vadd.f32 %v535, %v652
          %v661 = vadd.f32 %v536, %v653
          %v662 = vadd.f32 %v537, %v654
          %v663 = vadd.f32 %v538, %v655
          %s664 = scalar_lea.vmem %s249, 192 [#allocation11]
          %665 = vst [vmem:[%s664] sm:$0xff] %v656
          %666 = vst [vmem:[%s664 + $0x8] sm:$0xff] %v657
          %667 = vst [vmem:[%s664 + $0x10] sm:$0xff] %v658
          %668 = vst [vmem:[%s664 + $0x18] sm:$0xff] %v659
          %669 = vst [vmem:[%s664 + $0x20] sm:$0xff] %v660
          %670 = vst [vmem:[%s664 + $0x28] sm:$0xff] %v661
          %671 = vst [vmem:[%s664 + $0x30] sm:$0xff] %v662
          %672 = vst [vmem:[%s664 + $0x38] sm:$0xff] %v663
          %673 = vmatprep.subr.mxu0 0.0
          %674 = vmatpush1.msra.mxu0 0.0
          %675 = vmatprep.subr.mxu0 0.0
          %676 = vmatpush1.msra.mxu0 0.0
          %677 = vmatprep.subr.mxu0 0.0
          %678 = vmatpush1.msra.mxu0 0.0
          %679 = vmatprep.subr.mxu0 0.0
          %680 = vmatpush1.msra.mxu0 0.0
          %681 = vmatprep.subr.mxu0 0.0
          %682 = vmatpush1.msra.mxu0 0.0
          %683 = vmatprep.subr.mxu0 0.0
          %684 = vmatpush1.msra.mxu0 0.0
          %685 = vmatprep.subr.mxu0 0.0
          %686 = vmatpush1.msra.mxu0 0.0
          %687 = vmatprep.subr.mxu0 0.0
          %688 = vmatpush1.msra.mxu0 0.0
          %689 = vmatprep.subr.mxu0 0.0
          %690 = vmatpush1.msra.mxu0 0.0
          %691 = vmatprep.subr.mxu0 0.0
          %692 = vmatpush1.msra.mxu0 0.0
          %693 = vmatprep.subr.mxu0 0.0
          %694 = vmatpush1.msra.mxu0 0.0
          %695 = vmatprep.subr.mxu0 0.0
          %696 = vmatpush1.msra.mxu0 0.0
          %697 = vmatprep.subr.mxu0 %v663
          %698 = vmatpush1.msra.mxu0 %v662
          %699 = vmatprep.subr.mxu0 %v661
          %700 = vmatpush1.msra.mxu0 %v660
          %701 = vmatprep.subr.mxu0 %v659
          %702 = vmatpush1.msra.mxu0 %v658
          %703 = vmatprep.subr.mxu0 %v657
          %704 = vmatpush1.msra.mxu0 %v656
          %705 = vmatprep.subr.mxu0 0.0
          %706 = vmatpush2.msra.mxu0 0.0
          %707 = vmatprep.subr.mxu0 0.0
          %708 = vmatpush2.msra.mxu0 0.0
          %709 = vmatprep.subr.mxu0 0.0
          %710 = vmatpush2.msra.mxu0 0.0
          %711 = vmatprep.subr.mxu0 0.0
          %712 = vmatpush2.msra.mxu0 0.0
          %713 = vmatprep.subr.mxu0 0.0
          %714 = vmatpush2.msra.mxu0 0.0
          %715 = vmatprep.subr.mxu0 0.0
          %716 = vmatpush2.msra.mxu0 0.0
          %717 = vmatprep.subr.mxu0 0.0
          %718 = vmatpush2.msra.mxu0 0.0
          %719 = vmatprep.subr.mxu0 0.0
          %720 = vmatpush2.msra.mxu0 0.0
          %721 = vmatprep.subr.mxu0 0.0
          %722 = vmatpush2.msra.mxu0 0.0
          %723 = vmatprep.subr.mxu0 0.0
          %724 = vmatpush2.msra.mxu0 0.0
          %725 = vmatprep.subr.mxu0 0.0
          %726 = vmatpush2.msra.mxu0 0.0
          %727 = vmatprep.subr.mxu0 0.0
          %728 = vmatpush2.msra.mxu0 0.0
          %729 = vmatprep.subr.mxu0 0.0
          %730 = vmatpush2.msra.mxu0 0.0
          %731 = vmatprep.subr.mxu0 0.0
          %732 = vmatpush2.msra.mxu0 0.0
          %733 = vmatprep.subr.mxu0 0.0
          %734 = vmatpush2.msra.mxu0 0.0
          %735 = vmatprep.subr.mxu0 0.0
          %736 = vmatpush2.msra.mxu0 0.0
          %737 = vmatprep.mubr.f32.mxu0 0.0
          %738 = vmatmul.mubr.f32.gmra.mxu0 %v288
          %v739 = vpop.f32.mrf.mxu0
          %v740 = vadd.f32 %v257, %v739
          %v741 = vpop.f32.mrf.mxu0
          %v742 = vadd.f32 %v258, %v741
          %743 = vmatprep.mubr.f32.mxu0 0.0
          %744 = vmatmul.mubr.f32.gmra.mxu0 %v291
          %v745 = vpop.f32.mrf.mxu0
          %v746 = vadd.f32 %v259, %v745
          %v747 = vpop.f32.mrf.mxu0
          %v748 = vadd.f32 %v260, %v747
          %749 = vmatprep.mubr.f32.mxu0 0.0
          %750 = vmatmul.mubr.f32.gmra.mxu0 %v294
          %v751 = vpop.f32.mrf.mxu0
          %v752 = vadd.f32 %v261, %v751
          %v753 = vpop.f32.mrf.mxu0
          %v754 = vadd.f32 %v262, %v753
          %755 = vmatprep.mubr.f32.mxu0 0.0
          %756 = vmatmul.mubr.f32.gmra.mxu0 %v297
          %v757 = vpop.f32.mrf.mxu0
          %v758 = vadd.f32 %v263, %v757
          %v759 = vpop.f32.mrf.mxu0
          %v760 = vadd.f32 %v264, %v759
          %761 = vdwg.mxu0
          %v762 = vtanh.pop %v740
          %v763 = vtanh.pop %v742
          %v764 = vtanh.pop %v746
          %v765 = vtanh.pop %v748
          %v766 = vtanh.pop %v752
          %v767 = vtanh.pop %v754
          %v768 = vtanh.pop %v758
          %v769 = vtanh.pop %v760
          %s770 = sadd.s32 %s285, 3
          %s771 = sld [smem:[#allocation4 + %s770]]
          %v772 = vstv %s771
          %v773 = vmul.f32 %v772, %v762
          %v774 = vmul.f32 %v772, %v763
          %v775 = vmul.f32 %v772, %v764
          %v776 = vmul.f32 %v772, %v765
          %v777 = vmul.f32 %v772, %v766
          %v778 = vmul.f32 %v772, %v767
          %v779 = vmul.f32 %v772, %v768
          %v780 = vmul.f32 %v772, %v769
          %v781 = vadd.f32 %v656, %v773
          %v782 = vadd.f32 %v657, %v774
          %v783 = vadd.f32 %v658, %v775
          %v784 = vadd.f32 %v659, %v776
          %v785 = vadd.f32 %v660, %v777
          %v786 = vadd.f32 %v661, %v778
          %v787 = vadd.f32 %v662, %v779
          %v788 = vadd.f32 %v663, %v780
          %s789 = scalar_lea.vmem %s249, 256 [#allocation11]
          %790 = vst [vmem:[%s789] sm:$0xff] %v781
          %791 = vst [vmem:[%s789 + $0x8] sm:$0xff] %v782
          %792 = vst [vmem:[%s789 + $0x10] sm:$0xff] %v783
          %793 = vst [vmem:[%s789 + $0x18] sm:$0xff] %v784
          %794 = vst [vmem:[%s789 + $0x20] sm:$0xff] %v785
          %795 = vst [vmem:[%s789 + $0x28] sm:$0xff] %v786
          %796 = vst [vmem:[%s789 + $0x30] sm:$0xff] %v787
          %797 = vst [vmem:[%s789 + $0x38] sm:$0xff] %v788
          %798 = vmatprep.subr.mxu0 0.0
          %799 = vmatpush1.msra.mxu0 0.0
          %800 = vmatprep.subr.mxu0 0.0
          %801 = vmatpush1.msra.mxu0 0.0
          %802 = vmatprep.subr.mxu0 0.0
          %803 = vmatpush1.msra.mxu0 0.0
          %804 = vmatprep.subr.mxu0 0.0
          %805 = vmatpush1.msra.mxu0 0.0
          %806 = vmatprep.subr.mxu0 0.0
          %807 = vmatpush1.msra.mxu0 0.0
          %808 = vmatprep.subr.mxu0 0.0
          %809 = vmatpush1.msra.mxu0 0.0
          %810 = vmatprep.subr.mxu0 0.0
          %811 = vmatpush1.msra.mxu0 0.0
          %812 = vmatprep.subr.mxu0 0.0
          %813 = vmatpush1.msra.mxu0 0.0
          %814 = vmatprep.subr.mxu0 0.0
          %815 = vmatpush1.msra.mxu0 0.0
          %816 = vmatprep.subr.mxu0 0.0
          %817 = vmatpush1.msra.mxu0 0.0
          %818 = vmatprep.subr.mxu0 0.0
          %819 = vmatpush1.msra.mxu0 0.0
          %820 = vmatprep.subr.mxu0 0.0
          %821 = vmatpush1.msra.mxu0 0.0
          %822 = vmatprep.subr.mxu0 %v788
          %823 = vmatpush1.msra.mxu0 %v787
          %824 = vmatprep.subr.mxu0 %v786
          %825 = vmatpush1.msra.mxu0 %v785
          %826 = vmatprep.subr.mxu0 %v784
          %827 = vmatpush1.msra.mxu0 %v783
          %828 = vmatprep.subr.mxu0 %v782
          %829 = vmatpush1.msra.mxu0 %v781
          %830 = vmatprep.subr.mxu0 0.0
          %831 = vmatpush2.msra.mxu0 0.0
          %832 = vmatprep.subr.mxu0 0.0
          %833 = vmatpush2.msra.mxu0 0.0
          %834 = vmatprep.subr.mxu0 0.0
          %835 = vmatpush2.msra.mxu0 0.0
          %836 = vmatprep.subr.mxu0 0.0
          %837 = vmatpush2.msra.mxu0 0.0
          %838 = vmatprep.subr.mxu0 0.0
          %839 = vmatpush2.msra.mxu0 0.0
          %840 = vmatprep.subr.mxu0 0.0
          %841 = vmatpush2.msra.mxu0 0.0
          %842 = vmatprep.subr.mxu0 0.0
          %843 = vmatpush2.msra.mxu0 0.0
          %844 = vmatprep.subr.mxu0 0.0
          %845 = vmatpush2.msra.mxu0 0.0
          %846 = vmatprep.subr.mxu0 0.0
          %847 = vmatpush2.msra.mxu0 0.0
          %848 = vmatprep.subr.mxu0 0.0
          %849 = vmatpush2.msra.mxu0 0.0
          %850 = vmatprep.subr.mxu0 0.0
          %851 = vmatpush2.msra.mxu0 0.0
          %852 = vmatprep.subr.mxu0 0.0
          %853 = vmatpush2.msra.mxu0 0.0
          %854 = vmatprep.subr.mxu0 0.0
          %855 = vmatpush2.msra.mxu0 0.0
          %856 = vmatprep.subr.mxu0 0.0
          %857 = vmatpush2.msra.mxu0 0.0
          %858 = vmatprep.subr.mxu0 0.0
          %859 = vmatpush2.msra.mxu0 0.0
          %860 = vmatprep.subr.mxu0 0.0
          %861 = vmatpush2.msra.mxu0 0.0
          %862 = vmatprep.mubr.f32.mxu0 0.0
          %863 = vmatmul.mubr.f32.gmra.mxu0 %v288
          %v864 = vpop.f32.mrf.mxu0
          %v865 = vadd.f32 %v257, %v864
          %v866 = vpop.f32.mrf.mxu0
          %v867 = vadd.f32 %v258, %v866
          %868 = vmatprep.mubr.f32.mxu0 0.0
          %869 = vmatmul.mubr.f32.gmra.mxu0 %v291
          %v870 = vpop.f32.mrf.mxu0
          %v871 = vadd.f32 %v259, %v870
          %v872 = vpop.f32.mrf.mxu0
          %v873 = vadd.f32 %v260, %v872
          %874 = vmatprep.mubr.f32.mxu0 0.0
          %875 = vmatmul.mubr.f32.gmra.mxu0 %v294
          %v876 = vpop.f32.mrf.mxu0
          %v877 = vadd.f32 %v261, %v876
          %v878 = vpop.f32.mrf.mxu0
          %v879 = vadd.f32 %v262, %v878
          %880 = vmatprep.mubr.f32.mxu0 0.0
          %881 = vmatmul.mubr.f32.gmra.mxu0 %v297
          %v882 = vpop.f32.mrf.mxu0
          %v883 = vadd.f32 %v263, %v882
          %v884 = vpop.f32.mrf.mxu0
          %v885 = vadd.f32 %v264, %v884
          %886 = vdwg.mxu0
          %v887 = vtanh.pop %v865
          %v888 = vtanh.pop %v867
          %v889 = vtanh.pop %v871
          %v890 = vtanh.pop %v873
          %v891 = vtanh.pop %v877
          %v892 = vtanh.pop %v879
          %v893 = vtanh.pop %v883
          %v894 = vtanh.pop %v885
          %s895 = sadd.s32 %s285, 4
          %s896 = sld [smem:[#allocation4 + %s895]]
          %v897 = vstv %s896
          %v898 = vmul.f32 %v897, %v887
          %v899 = vmul.f32 %v897, %v888
          %v900 = vmul.f32 %v897, %v889
          %v901 = vmul.f32 %v897, %v890
          %v902 = vmul.f32 %v897, %v891
          %v903 = vmul.f32 %v897, %v892
          %v904 = vmul.f32 %v897, %v893
          %v905 = vmul.f32 %v897, %v894
          %v906 = vadd.f32 %v781, %v898
          %v907 = vadd.f32 %v782, %v899
          %v908 = vadd.f32 %v783, %v900
          %v909 = vadd.f32 %v784, %v901
          %v910 = vadd.f32 %v785, %v902
          %v911 = vadd.f32 %v786, %v903
          %v912 = vadd.f32 %v787, %v904
          %v913 = vadd.f32 %v788, %v905
          %s914 = scalar_lea.vmem %s249, 320 [#allocation11]
          %915 = vst [vmem:[%s914] sm:$0xff] %v906
          %916 = vst [vmem:[%s914 + $0x8] sm:$0xff] %v907
          %917 = vst [vmem:[%s914 + $0x10] sm:$0xff] %v908
          %918 = vst [vmem:[%s914 + $0x18] sm:$0xff] %v909
          %919 = vst [vmem:[%s914 + $0x20] sm:$0xff] %v910
          %920 = vst [vmem:[%s914 + $0x28] sm:$0xff] %v911
          %921 = vst [vmem:[%s914 + $0x30] sm:$0xff] %v912
          %922 = vst [vmem:[%s914 + $0x38] sm:$0xff] %v913
          %923 = vmatprep.subr.mxu0 0.0
          %924 = vmatpush1.msra.mxu0 0.0
          %925 = vmatprep.subr.mxu0 0.0
          %926 = vmatpush1.msra.mxu0 0.0
          %927 = vmatprep.subr.mxu0 0.0
          %928 = vmatpush1.msra.mxu0 0.0
          %929 = vmatprep.subr.mxu0 0.0
          %930 = vmatpush1.msra.mxu0 0.0
          %931 = vmatprep.subr.mxu0 0.0
          %932 = vmatpush1.msra.mxu0 0.0
          %933 = vmatprep.subr.mxu0 0.0
          %934 = vmatpush1.msra.mxu0 0.0
          %935 = vmatprep.subr.mxu0 0.0
          %936 = vmatpush1.msra.mxu0 0.0
          %937 = vmatprep.subr.mxu0 0.0
          %938 = vmatpush1.msra.mxu0 0.0
          %939 = vmatprep.subr.mxu0 0.0
          %940 = vmatpush1.msra.mxu0 0.0
          %941 = vmatprep.subr.mxu0 0.0
          %942 = vmatpush1.msra.mxu0 0.0
          %943 = vmatprep.subr.mxu0 0.0
          %944 = vmatpush1.msra.mxu0 0.0
          %945 = vmatprep.subr.mxu0 0.0
          %946 = vmatpush1.msra.mxu0 0.0
          %947 = vmatprep.subr.mxu0 %v913
          %948 = vmatpush1.msra.mxu0 %v912
          %949 = vmatprep.subr.mxu0 %v911
          %950 = vmatpush1.msra.mxu0 %v910
          %951 = vmatprep.subr.mxu0 %v909
          %952 = vmatpush1.msra.mxu0 %v908
          %953 = vmatprep.subr.mxu0 %v907
          %954 = vmatpush1.msra.mxu0 %v906
          %955 = vmatprep.subr.mxu0 0.0
          %956 = vmatpush2.msra.mxu0 0.0
          %957 = vmatprep.subr.mxu0 0.0
          %958 = vmatpush2.msra.mxu0 0.0
          %959 = vmatprep.subr.mxu0 0.0
          %960 = vmatpush2.msra.mxu0 0.0
          %961 = vmatprep.subr.mxu0 0.0
          %962 = vmatpush2.msra.mxu0 0.0
          %963 = vmatprep.subr.mxu0 0.0
          %964 = vmatpush2.msra.mxu0 0.0
          %965 = vmatprep.subr.mxu0 0.0
          %966 = vmatpush2.msra.mxu0 0.0
          %967 = vmatprep.subr.mxu0 0.0
          %968 = vmatpush2.msra.mxu0 0.0
          %969 = vmatprep.subr.mxu0 0.0
          %970 = vmatpush2.msra.mxu0 0.0
          %971 = vmatprep.subr.mxu0 0.0
          %972 = vmatpush2.msra.mxu0 0.0
          %973 = vmatprep.subr.mxu0 0.0
          %974 = vmatpush2.msra.mxu0 0.0
          %975 = vmatprep.subr.mxu0 0.0
          %976 = vmatpush2.msra.mxu0 0.0
          %977 = vmatprep.subr.mxu0 0.0
          %978 = vmatpush2.msra.mxu0 0.0
          %979 = vmatprep.subr.mxu0 0.0
          %980 = vmatpush2.msra.mxu0 0.0
          %981 = vmatprep.subr.mxu0 0.0
          %982 = vmatpush2.msra.mxu0 0.0
          %983 = vmatprep.subr.mxu0 0.0
          %984 = vmatpush2.msra.mxu0 0.0
          %985 = vmatprep.subr.mxu0 0.0
          %986 = vmatpush2.msra.mxu0 0.0
          %987 = vmatprep.mubr.f32.mxu0 0.0
          %988 = vmatmul.mubr.f32.gmra.mxu0 %v288
          %v989 = vpop.f32.mrf.mxu0
          %v990 = vadd.f32 %v257, %v989
          %v991 = vpop.f32.mrf.mxu0
          %v992 = vadd.f32 %v258, %v991
          %993 = vmatprep.mubr.f32.mxu0 0.0
          %994 = vmatmul.mubr.f32.gmra.mxu0 %v291
          %v995 = vpop.f32.mrf.mxu0
          %v996 = vadd.f32 %v259, %v995
          %v997 = vpop.f32.mrf.mxu0
          %v998 = vadd.f32 %v260, %v997
          %999 = vmatprep.mubr.f32.mxu0 0.0
          %1000 = vmatmul.mubr.f32.gmra.mxu0 %v294
          %v1001 = vpop.f32.mrf.mxu0
          %v1002 = vadd.f32 %v261, %v1001
          %v1003 = vpop.f32.mrf.mxu0
          %v1004 = vadd.f32 %v262, %v1003
          %1005 = vmatprep.mubr.f32.mxu0 0.0
          %1006 = vmatmul.mubr.f32.gmra.mxu0 %v297
          %v1007 = vpop.f32.mrf.mxu0
          %v1008 = vadd.f32 %v263, %v1007
          %v1009 = vpop.f32.mrf.mxu0
          %v1010 = vadd.f32 %v264, %v1009
          %1011 = vdwg.mxu0
          %v1012 = vtanh.pop %v990
          %v1013 = vtanh.pop %v992
          %v1014 = vtanh.pop %v996
          %v1015 = vtanh.pop %v998
          %v1016 = vtanh.pop %v1002
          %v1017 = vtanh.pop %v1004
          %v1018 = vtanh.pop %v1008
          %v1019 = vtanh.pop %v1010
          %s1020 = sadd.s32 %s285, 5
          %s1021 = sld [smem:[#allocation4 + %s1020]]
          %v1022 = vstv %s1021
          %v1023 = vmul.f32 %v1022, %v1012
          %v1024 = vmul.f32 %v1022, %v1013
          %v1025 = vmul.f32 %v1022, %v1014
          %v1026 = vmul.f32 %v1022, %v1015
          %v1027 = vmul.f32 %v1022, %v1016
          %v1028 = vmul.f32 %v1022, %v1017
          %v1029 = vmul.f32 %v1022, %v1018
          %v1030 = vmul.f32 %v1022, %v1019
          %v1031 = vadd.f32 %v906, %v1023
          %v1032 = vadd.f32 %v907, %v1024
          %v1033 = vadd.f32 %v908, %v1025
          %v1034 = vadd.f32 %v909, %v1026
          %v1035 = vadd.f32 %v910, %v1027
          %v1036 = vadd.f32 %v911, %v1028
          %v1037 = vadd.f32 %v912, %v1029
          %v1038 = vadd.f32 %v913, %v1030
          %s1039 = scalar_lea.vmem %s249, 384 [#allocation11]
          %1040 = vst [vmem:[%s1039] sm:$0xff] %v1031
          %1041 = vst [vmem:[%s1039 + $0x8] sm:$0xff] %v1032
          %1042 = vst [vmem:[%s1039 + $0x10] sm:$0xff] %v1033
          %1043 = vst [vmem:[%s1039 + $0x18] sm:$0xff] %v1034
          %1044 = vst [vmem:[%s1039 + $0x20] sm:$0xff] %v1035
          %1045 = vst [vmem:[%s1039 + $0x28] sm:$0xff] %v1036
          %1046 = vst [vmem:[%s1039 + $0x30] sm:$0xff] %v1037
          %1047 = vst [vmem:[%s1039 + $0x38] sm:$0xff] %v1038
          %1048 = vmatprep.subr.mxu0 0.0
          %1049 = vmatpush1.msra.mxu0 0.0
          %1050 = vmatprep.subr.mxu0 0.0
          %1051 = vmatpush1.msra.mxu0 0.0
          %1052 = vmatprep.subr.mxu0 0.0
          %1053 = vmatpush1.msra.mxu0 0.0
          %1054 = vmatprep.subr.mxu0 0.0
          %1055 = vmatpush1.msra.mxu0 0.0
          %1056 = vmatprep.subr.mxu0 0.0
          %1057 = vmatpush1.msra.mxu0 0.0
          %1058 = vmatprep.subr.mxu0 0.0
          %1059 = vmatpush1.msra.mxu0 0.0
          %1060 = vmatprep.subr.mxu0 0.0
          %1061 = vmatpush1.msra.mxu0 0.0
          %1062 = vmatprep.subr.mxu0 0.0
          %1063 = vmatpush1.msra.mxu0 0.0
          %1064 = vmatprep.subr.mxu0 0.0
          %1065 = vmatpush1.msra.mxu0 0.0
          %1066 = vmatprep.subr.mxu0 0.0
          %1067 = vmatpush1.msra.mxu0 0.0
          %1068 = vmatprep.subr.mxu0 0.0
          %1069 = vmatpush1.msra.mxu0 0.0
          %1070 = vmatprep.subr.mxu0 0.0
          %1071 = vmatpush1.msra.mxu0 0.0
          %1072 = vmatprep.subr.mxu0 %v1038
          %1073 = vmatpush1.msra.mxu0 %v1037
          %1074 = vmatprep.subr.mxu0 %v1036
          %1075 = vmatpush1.msra.mxu0 %v1035
          %1076 = vmatprep.subr.mxu0 %v1034
          %1077 = vmatpush1.msra.mxu0 %v1033
          %1078 = vmatprep.subr.mxu0 %v1032
          %1079 = vmatpush1.msra.mxu0 %v1031
          %1080 = vmatprep.subr.mxu0 0.0
          %1081 = vmatpush2.msra.mxu0 0.0
          %1082 = vmatprep.subr.mxu0 0.0
          %1083 = vmatpush2.msra.mxu0 0.0
          %1084 = vmatprep.subr.mxu0 0.0
          %1085 = vmatpush2.msra.mxu0 0.0
          %1086 = vmatprep.subr.mxu0 0.0
          %1087 = vmatpush2.msra.mxu0 0.0
          %1088 = vmatprep.subr.mxu0 0.0
          %1089 = vmatpush2.msra.mxu0 0.0
          %1090 = vmatprep.subr.mxu0 0.0
          %1091 = vmatpush2.msra.mxu0 0.0
          %1092 = vmatprep.subr.mxu0 0.0
          %1093 = vmatpush2.msra.mxu0 0.0
          %1094 = vmatprep.subr.mxu0 0.0
          %1095 = vmatpush2.msra.mxu0 0.0
          %1096 = vmatprep.subr.mxu0 0.0
          %1097 = vmatpush2.msra.mxu0 0.0
          %1098 = vmatprep.subr.mxu0 0.0
          %1099 = vmatpush2.msra.mxu0 0.0
          %1100 = vmatprep.subr.mxu0 0.0
          %1101 = vmatpush2.msra.mxu0 0.0
          %1102 = vmatprep.subr.mxu0 0.0
          %1103 = vmatpush2.msra.mxu0 0.0
          %1104 = vmatprep.subr.mxu0 0.0
          %1105 = vmatpush2.msra.mxu0 0.0
          %1106 = vmatprep.subr.mxu0 0.0
          %1107 = vmatpush2.msra.mxu0 0.0
          %1108 = vmatprep.subr.mxu0 0.0
          %1109 = vmatpush2.msra.mxu0 0.0
          %1110 = vmatprep.subr.mxu0 0.0
          %1111 = vmatpush2.msra.mxu0 0.0
          %1112 = vmatprep.mubr.f32.mxu0 0.0
          %1113 = vmatmul.mubr.f32.gmra.mxu0 %v288
          %v1114 = vpop.f32.mrf.mxu0
          %v1115 = vadd.f32 %v257, %v1114
          %v1116 = vpop.f32.mrf.mxu0
          %v1117 = vadd.f32 %v258, %v1116
          %1118 = vmatprep.mubr.f32.mxu0 0.0
          %1119 = vmatmul.mubr.f32.gmra.mxu0 %v291
          %v1120 = vpop.f32.mrf.mxu0
          %v1121 = vadd.f32 %v259, %v1120
          %v1122 = vpop.f32.mrf.mxu0
          %v1123 = vadd.f32 %v260, %v1122
          %1124 = vmatprep.mubr.f32.mxu0 0.0
          %1125 = vmatmul.mubr.f32.gmra.mxu0 %v294
          %v1126 = vpop.f32.mrf.mxu0
          %v1127 = vadd.f32 %v261, %v1126
          %v1128 = vpop.f32.mrf.mxu0
          %v1129 = vadd.f32 %v262, %v1128
          %1130 = vmatprep.mubr.f32.mxu0 0.0
          %1131 = vmatmul.mubr.f32.gmra.mxu0 %v297
          %v1132 = vpop.f32.mrf.mxu0
          %v1133 = vadd.f32 %v263, %v1132
          %v1134 = vpop.f32.mrf.mxu0
          %v1135 = vadd.f32 %v264, %v1134
          %1136 = vdwg.mxu0
          %v1137 = vtanh.pop %v1115
          %v1138 = vtanh.pop %v1117
          %v1139 = vtanh.pop %v1121
          %v1140 = vtanh.pop %v1123
          %v1141 = vtanh.pop %v1127
          %v1142 = vtanh.pop %v1129
          %v1143 = vtanh.pop %v1133
          %v1144 = vtanh.pop %v1135
          %s1145 = sadd.s32 %s285, 6
          %s1146 = sld [smem:[#allocation4 + %s1145]]
          %v1147 = vstv %s1146
          %v1148 = vmul.f32 %v1147, %v1137
          %v1149 = vmul.f32 %v1147, %v1138
          %v1150 = vmul.f32 %v1147, %v1139
          %v1151 = vmul.f32 %v1147, %v1140
          %v1152 = vmul.f32 %v1147, %v1141
          %v1153 = vmul.f32 %v1147, %v1142
          %v1154 = vmul.f32 %v1147, %v1143
          %v1155 = vmul.f32 %v1147, %v1144
          %v1156 = vadd.f32 %v1031, %v1148
          %v1157 = vadd.f32 %v1032, %v1149
          %v1158 = vadd.f32 %v1033, %v1150
          %v1159 = vadd.f32 %v1034, %v1151
          %v1160 = vadd.f32 %v1035, %v1152
          %v1161 = vadd.f32 %v1036, %v1153
          %v1162 = vadd.f32 %v1037, %v1154
          %v1163 = vadd.f32 %v1038, %v1155
          %s1164 = scalar_lea.vmem %s249, 448 [#allocation11]
          %1165 = vst [vmem:[%s1164] sm:$0xff] %v1156
          %1166 = vst [vmem:[%s1164 + $0x8] sm:$0xff] %v1157
          %1167 = vst [vmem:[%s1164 + $0x10] sm:$0xff] %v1158
          %1168 = vst [vmem:[%s1164 + $0x18] sm:$0xff] %v1159
          %1169 = vst [vmem:[%s1164 + $0x20] sm:$0xff] %v1160
          %1170 = vst [vmem:[%s1164 + $0x28] sm:$0xff] %v1161
          %1171 = vst [vmem:[%s1164 + $0x30] sm:$0xff] %v1162
          %1172 = vst [vmem:[%s1164 + $0x38] sm:$0xff] %v1163
          %1173 = vst [vmem:[#allocation2] sm:$0xff] %v1156
          %1174 = vst [vmem:[#allocation2 + $0x8] sm:$0xff] %v1157
          %1175 = vst [vmem:[#allocation2 + $0x10] sm:$0xff] %v1158
          %1176 = vst [vmem:[#allocation2 + $0x18] sm:$0xff] %v1159
          %1177 = vst [vmem:[#allocation2 + $0x20] sm:$0xff] %v1160
          %1178 = vst [vmem:[#allocation2 + $0x28] sm:$0xff] %v1161
          %1179 = vst [vmem:[#allocation2 + $0x30] sm:$0xff] %v1162
          %1180 = vst [vmem:[#allocation2 + $0x38] sm:$0xff] %v1163
        $region48: #{tpu_custom_call.1} parent=31 // pred_fallthru
          _
        %p1181 = scmp.gt.s32.totalorder %s33, 0
        // Predicated region
        $region49: #{tpu_custom_call.1} parent=31 // pred_check
          %p1182 = pneg %p1181
        $region50: #{tpu_custom_call.1} parent=31 // pred_check_branch
          %1184 = sbr.rel (%p1182) target = $region52
        $region51: #{tpu_custom_call.1} parent=31 // pred_region
          %v1185 = vld [vmem:[#allocation2] sm:$0xff]
          %v1186 = vld [vmem:[#allocation2 + $0x8] sm:$0xff]
          %v1187 = vld [vmem:[#allocation2 + $0x10] sm:$0xff]
          %v1188 = vld [vmem:[#allocation2 + $0x18] sm:$0xff]
          %v1189 = vld [vmem:[#allocation2 + $0x20] sm:$0xff]
          %v1190 = vld [vmem:[#allocation2 + $0x28] sm:$0xff]
          %v1191 = vld [vmem:[#allocation2 + $0x30] sm:$0xff]
          %v1192 = vld [vmem:[#allocation2 + $0x38] sm:$0xff]
          %s1193 = smul.u32 %s33, 8
          %vm1194 = vcmask 261120
          %v1196 = vsel %vm1194, %v253, 0
          %v1199 = vsel %vm1194, %v254, 0
          %v1202 = vsel %vm1194, %v255, 0
          %v1205 = vsel %vm1194, %v256, 0
          %1207 = vmatprep.subr.mxu0 0.0
          %1208 = vmatpush1.msra.mxu0 0.0
          %1209 = vmatprep.subr.mxu0 0.0
          %1210 = vmatpush1.msra.mxu0 0.0
          %1211 = vmatprep.subr.mxu0 0.0
          %1212 = vmatpush1.msra.mxu0 0.0
          %1213 = vmatprep.subr.mxu0 0.0
          %1214 = vmatpush1.msra.mxu0 0.0
          %1215 = vmatprep.subr.mxu0 0.0
          %1216 = vmatpush1.msra.mxu0 0.0
          %1217 = vmatprep.subr.mxu0 0.0
          %1218 = vmatpush1.msra.mxu0 0.0
          %1219 = vmatprep.subr.mxu0 0.0
          %1220 = vmatpush1.msra.mxu0 0.0
          %1221 = vmatprep.subr.mxu0 0.0
          %1222 = vmatpush1.msra.mxu0 0.0
          %1223 = vmatprep.subr.mxu0 0.0
          %1224 = vmatpush1.msra.mxu0 0.0
          %1225 = vmatprep.subr.mxu0 0.0
          %1226 = vmatpush1.msra.mxu0 0.0
          %1227 = vmatprep.subr.mxu0 0.0
          %1228 = vmatpush1.msra.mxu0 0.0
          %1229 = vmatprep.subr.mxu0 0.0
          %1230 = vmatpush1.msra.mxu0 0.0
          %1231 = vmatprep.subr.mxu0 %v1192
          %1232 = vmatpush1.msra.mxu0 %v1191
          %1233 = vmatprep.subr.mxu0 %v1190
          %1234 = vmatpush1.msra.mxu0 %v1189
          %1235 = vmatprep.subr.mxu0 %v1188
          %1236 = vmatpush1.msra.mxu0 %v1187
          %1237 = vmatprep.subr.mxu0 %v1186
          %1238 = vmatpush1.msra.mxu0 %v1185
          %1239 = vmatprep.subr.mxu0 0.0
          %1240 = vmatpush2.msra.mxu0 0.0
          %1241 = vmatprep.subr.mxu0 0.0
          %1242 = vmatpush2.msra.mxu0 0.0
          %1243 = vmatprep.subr.mxu0 0.0
          %1244 = vmatpush2.msra.mxu0 0.0
          %1245 = vmatprep.subr.mxu0 0.0
          %1246 = vmatpush2.msra.mxu0 0.0
          %1247 = vmatprep.subr.mxu0 0.0
          %1248 = vmatpush2.msra.mxu0 0.0
          %1249 = vmatprep.subr.mxu0 0.0
          %1250 = vmatpush2.msra.mxu0 0.0
          %1251 = vmatprep.subr.mxu0 0.0
          %1252 = vmatpush2.msra.mxu0 0.0
          %1253 = vmatprep.subr.mxu0 0.0
          %1254 = vmatpush2.msra.mxu0 0.0
          %1255 = vmatprep.subr.mxu0 0.0
          %1256 = vmatpush2.msra.mxu0 0.0
          %1257 = vmatprep.subr.mxu0 0.0
          %1258 = vmatpush2.msra.mxu0 0.0
          %1259 = vmatprep.subr.mxu0 0.0
          %1260 = vmatpush2.msra.mxu0 0.0
          %1261 = vmatprep.subr.mxu0 0.0
          %1262 = vmatpush2.msra.mxu0 0.0
          %1263 = vmatprep.subr.mxu0 0.0
          %1264 = vmatpush2.msra.mxu0 0.0
          %1265 = vmatprep.subr.mxu0 0.0
          %1266 = vmatpush2.msra.mxu0 0.0
          %1267 = vmatprep.subr.mxu0 0.0
          %1268 = vmatpush2.msra.mxu0 0.0
          %1269 = vmatprep.subr.mxu0 0.0
          %1270 = vmatpush2.msra.mxu0 0.0
          %1271 = vmatprep.mubr.f32.mxu0 0.0
          %1272 = vmatmul.mubr.f32.gmra.mxu0 %v1196
          %v1273 = vpop.f32.mrf.mxu0
          %v1274 = vadd.f32 %v257, %v1273
          %v1275 = vpop.f32.mrf.mxu0
          %v1276 = vadd.f32 %v258, %v1275
          %1277 = vmatprep.mubr.f32.mxu0 0.0
          %1278 = vmatmul.mubr.f32.gmra.mxu0 %v1199
          %v1279 = vpop.f32.mrf.mxu0
          %v1280 = vadd.f32 %v259, %v1279
          %v1281 = vpop.f32.mrf.mxu0
          %v1282 = vadd.f32 %v260, %v1281
          %1283 = vmatprep.mubr.f32.mxu0 0.0
          %1284 = vmatmul.mubr.f32.gmra.mxu0 %v1202
          %v1285 = vpop.f32.mrf.mxu0
          %v1286 = vadd.f32 %v261, %v1285
          %v1287 = vpop.f32.mrf.mxu0
          %v1288 = vadd.f32 %v262, %v1287
          %1289 = vmatprep.mubr.f32.mxu0 0.0
          %1290 = vmatmul.mubr.f32.gmra.mxu0 %v1205
          %v1291 = vpop.f32.mrf.mxu0
          %v1292 = vadd.f32 %v263, %v1291
          %v1293 = vpop.f32.mrf.mxu0
          %v1294 = vadd.f32 %v264, %v1293
          %1295 = vdwg.mxu0
          %v1296 = vtanh.pop %v1274
          %v1297 = vtanh.pop %v1276
          %v1298 = vtanh.pop %v1280
          %v1299 = vtanh.pop %v1282
          %v1300 = vtanh.pop %v1286
          %v1301 = vtanh.pop %v1288
          %v1302 = vtanh.pop %v1292
          %v1303 = vtanh.pop %v1294
          %s1304 = sadd.s32 %s1193, 4294967295
          %s1305 = sld [smem:[#allocation4 + %s1304]]
          %v1306 = vstv %s1305
          %v1307 = vmul.f32 %v1306, %v1296
          %v1308 = vmul.f32 %v1306, %v1297
          %v1309 = vmul.f32 %v1306, %v1298
          %v1310 = vmul.f32 %v1306, %v1299
          %v1311 = vmul.f32 %v1306, %v1300
          %v1312 = vmul.f32 %v1306, %v1301
          %v1313 = vmul.f32 %v1306, %v1302
          %v1314 = vmul.f32 %v1306, %v1303
          %v1315 = vadd.f32 %v1185, %v1307
          %v1316 = vadd.f32 %v1186, %v1308
          %v1317 = vadd.f32 %v1187, %v1309
          %v1318 = vadd.f32 %v1188, %v1310
          %v1319 = vadd.f32 %v1189, %v1311
          %v1320 = vadd.f32 %v1190, %v1312
          %v1321 = vadd.f32 %v1191, %v1313
          %v1322 = vadd.f32 %v1192, %v1314
          %1323 = vst [vmem:[%s249] sm:$0xff] %v1315
          %1324 = vst [vmem:[%s249 + $0x8] sm:$0xff] %v1316
          %1325 = vst [vmem:[%s249 + $0x10] sm:$0xff] %v1317
          %1326 = vst [vmem:[%s249 + $0x18] sm:$0xff] %v1318
          %1327 = vst [vmem:[%s249 + $0x20] sm:$0xff] %v1319
          %1328 = vst [vmem:[%s249 + $0x28] sm:$0xff] %v1320
          %1329 = vst [vmem:[%s249 + $0x30] sm:$0xff] %v1321
          %1330 = vst [vmem:[%s249 + $0x38] sm:$0xff] %v1322
          %1331 = vmatprep.subr.mxu0 0.0
          %1332 = vmatpush1.msra.mxu0 0.0
          %1333 = vmatprep.subr.mxu0 0.0
          %1334 = vmatpush1.msra.mxu0 0.0
          %1335 = vmatprep.subr.mxu0 0.0
          %1336 = vmatpush1.msra.mxu0 0.0
          %1337 = vmatprep.subr.mxu0 0.0
          %1338 = vmatpush1.msra.mxu0 0.0
          %1339 = vmatprep.subr.mxu0 0.0
          %1340 = vmatpush1.msra.mxu0 0.0
          %1341 = vmatprep.subr.mxu0 0.0
          %1342 = vmatpush1.msra.mxu0 0.0
          %1343 = vmatprep.subr.mxu0 0.0
          %1344 = vmatpush1.msra.mxu0 0.0
          %1345 = vmatprep.subr.mxu0 0.0
          %1346 = vmatpush1.msra.mxu0 0.0
          %1347 = vmatprep.subr.mxu0 0.0
          %1348 = vmatpush1.msra.mxu0 0.0
          %1349 = vmatprep.subr.mxu0 0.0
          %1350 = vmatpush1.msra.mxu0 0.0
          %1351 = vmatprep.subr.mxu0 0.0
          %1352 = vmatpush1.msra.mxu0 0.0
          %1353 = vmatprep.subr.mxu0 0.0
          %1354 = vmatpush1.msra.mxu0 0.0
          %1355 = vmatprep.subr.mxu0 %v1322
          %1356 = vmatpush1.msra.mxu0 %v1321
          %1357 = vmatprep.subr.mxu0 %v1320
          %1358 = vmatpush1.msra.mxu0 %v1319
          %1359 = vmatprep.subr.mxu0 %v1318
          %1360 = vmatpush1.msra.mxu0 %v1317
          %1361 = vmatprep.subr.mxu0 %v1316
          %1362 = vmatpush1.msra.mxu0 %v1315
          %1363 = vmatprep.subr.mxu0 0.0
          %1364 = vmatpush2.msra.mxu0 0.0
          %1365 = vmatprep.subr.mxu0 0.0
          %1366 = vmatpush2.msra.mxu0 0.0
          %1367 = vmatprep.subr.mxu0 0.0
          %1368 = vmatpush2.msra.mxu0 0.0
          %1369 = vmatprep.subr.mxu0 0.0
          %1370 = vmatpush2.msra.mxu0 0.0
          %1371 = vmatprep.subr.mxu0 0.0
          %1372 = vmatpush2.msra.mxu0 0.0
          %1373 = vmatprep.subr.mxu0 0.0
          %1374 = vmatpush2.msra.mxu0 0.0
          %1375 = vmatprep.subr.mxu0 0.0
          %1376 = vmatpush2.msra.mxu0 0.0
          %1377 = vmatprep.subr.mxu0 0.0
          %1378 = vmatpush2.msra.mxu0 0.0
          %1379 = vmatprep.subr.mxu0 0.0
          %1380 = vmatpush2.msra.mxu0 0.0
          %1381 = vmatprep.subr.mxu0 0.0
          %1382 = vmatpush2.msra.mxu0 0.0
          %1383 = vmatprep.subr.mxu0 0.0
          %1384 = vmatpush2.msra.mxu0 0.0
          %1385 = vmatprep.subr.mxu0 0.0
          %1386 = vmatpush2.msra.mxu0 0.0
          %1387 = vmatprep.subr.mxu0 0.0
          %1388 = vmatpush2.msra.mxu0 0.0
          %1389 = vmatprep.subr.mxu0 0.0
          %1390 = vmatpush2.msra.mxu0 0.0
          %1391 = vmatprep.subr.mxu0 0.0
          %1392 = vmatpush2.msra.mxu0 0.0
          %1393 = vmatprep.subr.mxu0 0.0
          %1394 = vmatpush2.msra.mxu0 0.0
          %1395 = vmatprep.mubr.f32.mxu0 0.0
          %1396 = vmatmul.mubr.f32.gmra.mxu0 %v1196
          %v1397 = vpop.f32.mrf.mxu0
          %v1398 = vadd.f32 %v257, %v1397
          %v1399 = vpop.f32.mrf.mxu0
          %v1400 = vadd.f32 %v258, %v1399
          %1401 = vmatprep.mubr.f32.mxu0 0.0
          %1402 = vmatmul.mubr.f32.gmra.mxu0 %v1199
          %v1403 = vpop.f32.mrf.mxu0
          %v1404 = vadd.f32 %v259, %v1403
          %v1405 = vpop.f32.mrf.mxu0
          %v1406 = vadd.f32 %v260, %v1405
          %1407 = vmatprep.mubr.f32.mxu0 0.0
          %1408 = vmatmul.mubr.f32.gmra.mxu0 %v1202
          %v1409 = vpop.f32.mrf.mxu0
          %v1410 = vadd.f32 %v261, %v1409
          %v1411 = vpop.f32.mrf.mxu0
          %v1412 = vadd.f32 %v262, %v1411
          %1413 = vmatprep.mubr.f32.mxu0 0.0
          %1414 = vmatmul.mubr.f32.gmra.mxu0 %v1205
          %v1415 = vpop.f32.mrf.mxu0
          %v1416 = vadd.f32 %v263, %v1415
          %v1417 = vpop.f32.mrf.mxu0
          %v1418 = vadd.f32 %v264, %v1417
          %1419 = vdwg.mxu0
          %v1420 = vtanh.pop %v1398
          %v1421 = vtanh.pop %v1400
          %v1422 = vtanh.pop %v1404
          %v1423 = vtanh.pop %v1406
          %v1424 = vtanh.pop %v1410
          %v1425 = vtanh.pop %v1412
          %v1426 = vtanh.pop %v1416
          %v1427 = vtanh.pop %v1418
          %s1428 = sld [smem:[#allocation4 + %s1193]]
          %v1429 = vstv %s1428
          %v1430 = vmul.f32 %v1429, %v1420
          %v1431 = vmul.f32 %v1429, %v1421
          %v1432 = vmul.f32 %v1429, %v1422
          %v1433 = vmul.f32 %v1429, %v1423
          %v1434 = vmul.f32 %v1429, %v1424
          %v1435 = vmul.f32 %v1429, %v1425
          %v1436 = vmul.f32 %v1429, %v1426
          %v1437 = vmul.f32 %v1429, %v1427
          %v1438 = vadd.f32 %v1315, %v1430
          %v1439 = vadd.f32 %v1316, %v1431
          %v1440 = vadd.f32 %v1317, %v1432
          %v1441 = vadd.f32 %v1318, %v1433
          %v1442 = vadd.f32 %v1319, %v1434
          %v1443 = vadd.f32 %v1320, %v1435
          %v1444 = vadd.f32 %v1321, %v1436
          %v1445 = vadd.f32 %v1322, %v1437
          %s1446 = scalar_lea.vmem %s249, 64 [#allocation11]
          %1447 = vst [vmem:[%s1446] sm:$0xff] %v1438
          %1448 = vst [vmem:[%s1446 + $0x8] sm:$0xff] %v1439
          %1449 = vst [vmem:[%s1446 + $0x10] sm:$0xff] %v1440
          %1450 = vst [vmem:[%s1446 + $0x18] sm:$0xff] %v1441
          %1451 = vst [vmem:[%s1446 + $0x20] sm:$0xff] %v1442
          %1452 = vst [vmem:[%s1446 + $0x28] sm:$0xff] %v1443
          %1453 = vst [vmem:[%s1446 + $0x30] sm:$0xff] %v1444
          %1454 = vst [vmem:[%s1446 + $0x38] sm:$0xff] %v1445
          %1455 = vmatprep.subr.mxu0 0.0
          %1456 = vmatpush1.msra.mxu0 0.0
          %1457 = vmatprep.subr.mxu0 0.0
          %1458 = vmatpush1.msra.mxu0 0.0
          %1459 = vmatprep.subr.mxu0 0.0
          %1460 = vmatpush1.msra.mxu0 0.0
          %1461 = vmatprep.subr.mxu0 0.0
          %1462 = vmatpush1.msra.mxu0 0.0
          %1463 = vmatprep.subr.mxu0 0.0
          %1464 = vmatpush1.msra.mxu0 0.0
          %1465 = vmatprep.subr.mxu0 0.0
          %1466 = vmatpush1.msra.mxu0 0.0
          %1467 = vmatprep.subr.mxu0 0.0
          %1468 = vmatpush1.msra.mxu0 0.0
          %1469 = vmatprep.subr.mxu0 0.0
          %1470 = vmatpush1.msra.mxu0 0.0
          %1471 = vmatprep.subr.mxu0 0.0
          %1472 = vmatpush1.msra.mxu0 0.0
          %1473 = vmatprep.subr.mxu0 0.0
          %1474 = vmatpush1.msra.mxu0 0.0
          %1475 = vmatprep.subr.mxu0 0.0
          %1476 = vmatpush1.msra.mxu0 0.0
          %1477 = vmatprep.subr.mxu0 0.0
          %1478 = vmatpush1.msra.mxu0 0.0
          %1479 = vmatprep.subr.mxu0 %v1445
          %1480 = vmatpush1.msra.mxu0 %v1444
          %1481 = vmatprep.subr.mxu0 %v1443
          %1482 = vmatpush1.msra.mxu0 %v1442
          %1483 = vmatprep.subr.mxu0 %v1441
          %1484 = vmatpush1.msra.mxu0 %v1440
          %1485 = vmatprep.subr.mxu0 %v1439
          %1486 = vmatpush1.msra.mxu0 %v1438
          %1487 = vmatprep.subr.mxu0 0.0
          %1488 = vmatpush2.msra.mxu0 0.0
          %1489 = vmatprep.subr.mxu0 0.0
          %1490 = vmatpush2.msra.mxu0 0.0
          %1491 = vmatprep.subr.mxu0 0.0
          %1492 = vmatpush2.msra.mxu0 0.0
          %1493 = vmatprep.subr.mxu0 0.0
          %1494 = vmatpush2.msra.mxu0 0.0
          %1495 = vmatprep.subr.mxu0 0.0
          %1496 = vmatpush2.msra.mxu0 0.0
          %1497 = vmatprep.subr.mxu0 0.0
          %1498 = vmatpush2.msra.mxu0 0.0
          %1499 = vmatprep.subr.mxu0 0.0
          %1500 = vmatpush2.msra.mxu0 0.0
          %1501 = vmatprep.subr.mxu0 0.0
          %1502 = vmatpush2.msra.mxu0 0.0
          %1503 = vmatprep.subr.mxu0 0.0
          %1504 = vmatpush2.msra.mxu0 0.0
          %1505 = vmatprep.subr.mxu0 0.0
          %1506 = vmatpush2.msra.mxu0 0.0
          %1507 = vmatprep.subr.mxu0 0.0
          %1508 = vmatpush2.msra.mxu0 0.0
          %1509 = vmatprep.subr.mxu0 0.0
          %1510 = vmatpush2.msra.mxu0 0.0
          %1511 = vmatprep.subr.mxu0 0.0
          %1512 = vmatpush2.msra.mxu0 0.0
          %1513 = vmatprep.subr.mxu0 0.0
          %1514 = vmatpush2.msra.mxu0 0.0
          %1515 = vmatprep.subr.mxu0 0.0
          %1516 = vmatpush2.msra.mxu0 0.0
          %1517 = vmatprep.subr.mxu0 0.0
          %1518 = vmatpush2.msra.mxu0 0.0
          %1519 = vmatprep.mubr.f32.mxu0 0.0
          %1520 = vmatmul.mubr.f32.gmra.mxu0 %v1196
          %v1521 = vpop.f32.mrf.mxu0
          %v1522 = vadd.f32 %v257, %v1521
          %v1523 = vpop.f32.mrf.mxu0
          %v1524 = vadd.f32 %v258, %v1523
          %1525 = vmatprep.mubr.f32.mxu0 0.0
          %1526 = vmatmul.mubr.f32.gmra.mxu0 %v1199
          %v1527 = vpop.f32.mrf.mxu0
          %v1528 = vadd.f32 %v259, %v1527
          %v1529 = vpop.f32.mrf.mxu0
          %v1530 = vadd.f32 %v260, %v1529
          %1531 = vmatprep.mubr.f32.mxu0 0.0
          %1532 = vmatmul.mubr.f32.gmra.mxu0 %v1202
          %v1533 = vpop.f32.mrf.mxu0
          %v1534 = vadd.f32 %v261, %v1533
          %v1535 = vpop.f32.mrf.mxu0
          %v1536 = vadd.f32 %v262, %v1535
          %1537 = vmatprep.mubr.f32.mxu0 0.0
          %1538 = vmatmul.mubr.f32.gmra.mxu0 %v1205
          %v1539 = vpop.f32.mrf.mxu0
          %v1540 = vadd.f32 %v263, %v1539
          %v1541 = vpop.f32.mrf.mxu0
          %v1542 = vadd.f32 %v264, %v1541
          %1543 = vdwg.mxu0
          %v1544 = vtanh.pop %v1522
          %v1545 = vtanh.pop %v1524
          %v1546 = vtanh.pop %v1528
          %v1547 = vtanh.pop %v1530
          %v1548 = vtanh.pop %v1534
          %v1549 = vtanh.pop %v1536
          %v1550 = vtanh.pop %v1540
          %v1551 = vtanh.pop %v1542
          %s1552 = sadd.s32 %s1193, 1
          %s1553 = sld [smem:[#allocation4 + %s1552]]
          %v1554 = vstv %s1553
          %v1555 = vmul.f32 %v1554, %v1544
          %v1556 = vmul.f32 %v1554, %v1545
          %v1557 = vmul.f32 %v1554, %v1546
          %v1558 = vmul.f32 %v1554, %v1547
          %v1559 = vmul.f32 %v1554, %v1548
          %v1560 = vmul.f32 %v1554, %v1549
          %v1561 = vmul.f32 %v1554, %v1550
          %v1562 = vmul.f32 %v1554, %v1551
          %v1563 = vadd.f32 %v1438, %v1555
          %v1564 = vadd.f32 %v1439, %v1556
          %v1565 = vadd.f32 %v1440, %v1557
          %v1566 = vadd.f32 %v1441, %v1558
          %v1567 = vadd.f32 %v1442, %v1559
          %v1568 = vadd.f32 %v1443, %v1560
          %v1569 = vadd.f32 %v1444, %v1561
          %v1570 = vadd.f32 %v1445, %v1562
          %s1571 = scalar_lea.vmem %s249, 128 [#allocation11]
          %1572 = vst [vmem:[%s1571] sm:$0xff] %v1563
          %1573 = vst [vmem:[%s1571 + $0x8] sm:$0xff] %v1564
          %1574 = vst [vmem:[%s1571 + $0x10] sm:$0xff] %v1565
          %1575 = vst [vmem:[%s1571 + $0x18] sm:$0xff] %v1566
          %1576 = vst [vmem:[%s1571 + $0x20] sm:$0xff] %v1567
          %1577 = vst [vmem:[%s1571 + $0x28] sm:$0xff] %v1568
          %1578 = vst [vmem:[%s1571 + $0x30] sm:$0xff] %v1569
          %1579 = vst [vmem:[%s1571 + $0x38] sm:$0xff] %v1570
          %1580 = vmatprep.subr.mxu0 0.0
          %1581 = vmatpush1.msra.mxu0 0.0
          %1582 = vmatprep.subr.mxu0 0.0
          %1583 = vmatpush1.msra.mxu0 0.0
          %1584 = vmatprep.subr.mxu0 0.0
          %1585 = vmatpush1.msra.mxu0 0.0
          %1586 = vmatprep.subr.mxu0 0.0
          %1587 = vmatpush1.msra.mxu0 0.0
          %1588 = vmatprep.subr.mxu0 0.0
          %1589 = vmatpush1.msra.mxu0 0.0
          %1590 = vmatprep.subr.mxu0 0.0
          %1591 = vmatpush1.msra.mxu0 0.0
          %1592 = vmatprep.subr.mxu0 0.0
          %1593 = vmatpush1.msra.mxu0 0.0
          %1594 = vmatprep.subr.mxu0 0.0
          %1595 = vmatpush1.msra.mxu0 0.0
          %1596 = vmatprep.subr.mxu0 0.0
          %1597 = vmatpush1.msra.mxu0 0.0
          %1598 = vmatprep.subr.mxu0 0.0
          %1599 = vmatpush1.msra.mxu0 0.0
          %1600 = vmatprep.subr.mxu0 0.0
          %1601 = vmatpush1.msra.mxu0 0.0
          %1602 = vmatprep.subr.mxu0 0.0
          %1603 = vmatpush1.msra.mxu0 0.0
          %1604 = vmatprep.subr.mxu0 %v1570
          %1605 = vmatpush1.msra.mxu0 %v1569
          %1606 = vmatprep.subr.mxu0 %v1568
          %1607 = vmatpush1.msra.mxu0 %v1567
          %1608 = vmatprep.subr.mxu0 %v1566
          %1609 = vmatpush1.msra.mxu0 %v1565
          %1610 = vmatprep.subr.mxu0 %v1564
          %1611 = vmatpush1.msra.mxu0 %v1563
          %1612 = vmatprep.subr.mxu0 0.0
          %1613 = vmatpush2.msra.mxu0 0.0
          %1614 = vmatprep.subr.mxu0 0.0
          %1615 = vmatpush2.msra.mxu0 0.0
          %1616 = vmatprep.subr.mxu0 0.0
          %1617 = vmatpush2.msra.mxu0 0.0
          %1618 = vmatprep.subr.mxu0 0.0
          %1619 = vmatpush2.msra.mxu0 0.0
          %1620 = vmatprep.subr.mxu0 0.0
          %1621 = vmatpush2.msra.mxu0 0.0
          %1622 = vmatprep.subr.mxu0 0.0
          %1623 = vmatpush2.msra.mxu0 0.0
          %1624 = vmatprep.subr.mxu0 0.0
          %1625 = vmatpush2.msra.mxu0 0.0
          %1626 = vmatprep.subr.mxu0 0.0
          %1627 = vmatpush2.msra.mxu0 0.0
          %1628 = vmatprep.subr.mxu0 0.0
          %1629 = vmatpush2.msra.mxu0 0.0
          %1630 = vmatprep.subr.mxu0 0.0
          %1631 = vmatpush2.msra.mxu0 0.0
          %1632 = vmatprep.subr.mxu0 0.0
          %1633 = vmatpush2.msra.mxu0 0.0
          %1634 = vmatprep.subr.mxu0 0.0
          %1635 = vmatpush2.msra.mxu0 0.0
          %1636 = vmatprep.subr.mxu0 0.0
          %1637 = vmatpush2.msra.mxu0 0.0
          %1638 = vmatprep.subr.mxu0 0.0
          %1639 = vmatpush2.msra.mxu0 0.0
          %1640 = vmatprep.subr.mxu0 0.0
          %1641 = vmatpush2.msra.mxu0 0.0
          %1642 = vmatprep.subr.mxu0 0.0
          %1643 = vmatpush2.msra.mxu0 0.0
          %1644 = vmatprep.mubr.f32.mxu0 0.0
          %1645 = vmatmul.mubr.f32.gmra.mxu0 %v1196
          %v1646 = vpop.f32.mrf.mxu0
          %v1647 = vadd.f32 %v257, %v1646
          %v1648 = vpop.f32.mrf.mxu0
          %v1649 = vadd.f32 %v258, %v1648
          %1650 = vmatprep.mubr.f32.mxu0 0.0
          %1651 = vmatmul.mubr.f32.gmra.mxu0 %v1199
          %v1652 = vpop.f32.mrf.mxu0
          %v1653 = vadd.f32 %v259, %v1652
          %v1654 = vpop.f32.mrf.mxu0
          %v1655 = vadd.f32 %v260, %v1654
          %1656 = vmatprep.mubr.f32.mxu0 0.0
          %1657 = vmatmul.mubr.f32.gmra.mxu0 %v1202
          %v1658 = vpop.f32.mrf.mxu0
          %v1659 = vadd.f32 %v261, %v1658
          %v1660 = vpop.f32.mrf.mxu0
          %v1661 = vadd.f32 %v262, %v1660
          %1662 = vmatprep.mubr.f32.mxu0 0.0
          %1663 = vmatmul.mubr.f32.gmra.mxu0 %v1205
          %v1664 = vpop.f32.mrf.mxu0
          %v1665 = vadd.f32 %v263, %v1664
          %v1666 = vpop.f32.mrf.mxu0
          %v1667 = vadd.f32 %v264, %v1666
          %1668 = vdwg.mxu0
          %v1669 = vtanh.pop %v1647
          %v1670 = vtanh.pop %v1649
          %v1671 = vtanh.pop %v1653
          %v1672 = vtanh.pop %v1655
          %v1673 = vtanh.pop %v1659
          %v1674 = vtanh.pop %v1661
          %v1675 = vtanh.pop %v1665
          %v1676 = vtanh.pop %v1667
          %s1677 = sadd.s32 %s1193, 2
          %s1678 = sld [smem:[#allocation4 + %s1677]]
          %v1679 = vstv %s1678
          %v1680 = vmul.f32 %v1679, %v1669
          %v1681 = vmul.f32 %v1679, %v1670
          %v1682 = vmul.f32 %v1679, %v1671
          %v1683 = vmul.f32 %v1679, %v1672
          %v1684 = vmul.f32 %v1679, %v1673
          %v1685 = vmul.f32 %v1679, %v1674
          %v1686 = vmul.f32 %v1679, %v1675
          %v1687 = vmul.f32 %v1679, %v1676
          %v1688 = vadd.f32 %v1563, %v1680
          %v1689 = vadd.f32 %v1564, %v1681
          %v1690 = vadd.f32 %v1565, %v1682
          %v1691 = vadd.f32 %v1566, %v1683
          %v1692 = vadd.f32 %v1567, %v1684
          %v1693 = vadd.f32 %v1568, %v1685
          %v1694 = vadd.f32 %v1569, %v1686
          %v1695 = vadd.f32 %v1570, %v1687
          %s1696 = scalar_lea.vmem %s249, 192 [#allocation11]
          %1697 = vst [vmem:[%s1696] sm:$0xff] %v1688
          %1698 = vst [vmem:[%s1696 + $0x8] sm:$0xff] %v1689
          %1699 = vst [vmem:[%s1696 + $0x10] sm:$0xff] %v1690
          %1700 = vst [vmem:[%s1696 + $0x18] sm:$0xff] %v1691
          %1701 = vst [vmem:[%s1696 + $0x20] sm:$0xff] %v1692
          %1702 = vst [vmem:[%s1696 + $0x28] sm:$0xff] %v1693
          %1703 = vst [vmem:[%s1696 + $0x30] sm:$0xff] %v1694
          %1704 = vst [vmem:[%s1696 + $0x38] sm:$0xff] %v1695
          %1705 = vmatprep.subr.mxu0 0.0
          %1706 = vmatpush1.msra.mxu0 0.0
          %1707 = vmatprep.subr.mxu0 0.0
          %1708 = vmatpush1.msra.mxu0 0.0
          %1709 = vmatprep.subr.mxu0 0.0
          %1710 = vmatpush1.msra.mxu0 0.0
          %1711 = vmatprep.subr.mxu0 0.0
          %1712 = vmatpush1.msra.mxu0 0.0
          %1713 = vmatprep.subr.mxu0 0.0
          %1714 = vmatpush1.msra.mxu0 0.0
          %1715 = vmatprep.subr.mxu0 0.0
          %1716 = vmatpush1.msra.mxu0 0.0
          %1717 = vmatprep.subr.mxu0 0.0
          %1718 = vmatpush1.msra.mxu0 0.0
          %1719 = vmatprep.subr.mxu0 0.0
          %1720 = vmatpush1.msra.mxu0 0.0
          %1721 = vmatprep.subr.mxu0 0.0
          %1722 = vmatpush1.msra.mxu0 0.0
          %1723 = vmatprep.subr.mxu0 0.0
          %1724 = vmatpush1.msra.mxu0 0.0
          %1725 = vmatprep.subr.mxu0 0.0
          %1726 = vmatpush1.msra.mxu0 0.0
          %1727 = vmatprep.subr.mxu0 0.0
          %1728 = vmatpush1.msra.mxu0 0.0
          %1729 = vmatprep.subr.mxu0 %v1695
          %1730 = vmatpush1.msra.mxu0 %v1694
          %1731 = vmatprep.subr.mxu0 %v1693
          %1732 = vmatpush1.msra.mxu0 %v1692
          %1733 = vmatprep.subr.mxu0 %v1691
          %1734 = vmatpush1.msra.mxu0 %v1690
          %1735 = vmatprep.subr.mxu0 %v1689
          %1736 = vmatpush1.msra.mxu0 %v1688
          %1737 = vmatprep.subr.mxu0 0.0
          %1738 = vmatpush2.msra.mxu0 0.0
          %1739 = vmatprep.subr.mxu0 0.0
          %1740 = vmatpush2.msra.mxu0 0.0
          %1741 = vmatprep.subr.mxu0 0.0
          %1742 = vmatpush2.msra.mxu0 0.0
          %1743 = vmatprep.subr.mxu0 0.0
          %1744 = vmatpush2.msra.mxu0 0.0
          %1745 = vmatprep.subr.mxu0 0.0
          %1746 = vmatpush2.msra.mxu0 0.0
          %1747 = vmatprep.subr.mxu0 0.0
          %1748 = vmatpush2.msra.mxu0 0.0
          %1749 = vmatprep.subr.mxu0 0.0
          %1750 = vmatpush2.msra.mxu0 0.0
          %1751 = vmatprep.subr.mxu0 0.0
          %1752 = vmatpush2.msra.mxu0 0.0
          %1753 = vmatprep.subr.mxu0 0.0
          %1754 = vmatpush2.msra.mxu0 0.0
          %1755 = vmatprep.subr.mxu0 0.0
          %1756 = vmatpush2.msra.mxu0 0.0
          %1757 = vmatprep.subr.mxu0 0.0
          %1758 = vmatpush2.msra.mxu0 0.0
          %1759 = vmatprep.subr.mxu0 0.0
          %1760 = vmatpush2.msra.mxu0 0.0
          %1761 = vmatprep.subr.mxu0 0.0
          %1762 = vmatpush2.msra.mxu0 0.0
          %1763 = vmatprep.subr.mxu0 0.0
          %1764 = vmatpush2.msra.mxu0 0.0
          %1765 = vmatprep.subr.mxu0 0.0
          %1766 = vmatpush2.msra.mxu0 0.0
          %1767 = vmatprep.subr.mxu0 0.0
          %1768 = vmatpush2.msra.mxu0 0.0
          %1769 = vmatprep.mubr.f32.mxu0 0.0
          %1770 = vmatmul.mubr.f32.gmra.mxu0 %v1196
          %v1771 = vpop.f32.mrf.mxu0
          %v1772 = vadd.f32 %v257, %v1771
          %v1773 = vpop.f32.mrf.mxu0
          %v1774 = vadd.f32 %v258, %v1773
          %1775 = vmatprep.mubr.f32.mxu0 0.0
          %1776 = vmatmul.mubr.f32.gmra.mxu0 %v1199
          %v1777 = vpop.f32.mrf.mxu0
          %v1778 = vadd.f32 %v259, %v1777
          %v1779 = vpop.f32.mrf.mxu0
          %v1780 = vadd.f32 %v260, %v1779
          %1781 = vmatprep.mubr.f32.mxu0 0.0
          %1782 = vmatmul.mubr.f32.gmra.mxu0 %v1202
          %v1783 = vpop.f32.mrf.mxu0
          %v1784 = vadd.f32 %v261, %v1783
          %v1785 = vpop.f32.mrf.mxu0
          %v1786 = vadd.f32 %v262, %v1785
          %1787 = vmatprep.mubr.f32.mxu0 0.0
          %1788 = vmatmul.mubr.f32.gmra.mxu0 %v1205
          %v1789 = vpop.f32.mrf.mxu0
          %v1790 = vadd.f32 %v263, %v1789
          %v1791 = vpop.f32.mrf.mxu0
          %v1792 = vadd.f32 %v264, %v1791
          %1793 = vdwg.mxu0
          %v1794 = vtanh.pop %v1772
          %v1795 = vtanh.pop %v1774
          %v1796 = vtanh.pop %v1778
          %v1797 = vtanh.pop %v1780
          %v1798 = vtanh.pop %v1784
          %v1799 = vtanh.pop %v1786
          %v1800 = vtanh.pop %v1790
          %v1801 = vtanh.pop %v1792
          %s1802 = sadd.s32 %s1193, 3
          %s1803 = sld [smem:[#allocation4 + %s1802]]
          %v1804 = vstv %s1803
          %v1805 = vmul.f32 %v1804, %v1794
          %v1806 = vmul.f32 %v1804, %v1795
          %v1807 = vmul.f32 %v1804, %v1796
          %v1808 = vmul.f32 %v1804, %v1797
          %v1809 = vmul.f32 %v1804, %v1798
          %v1810 = vmul.f32 %v1804, %v1799
          %v1811 = vmul.f32 %v1804, %v1800
          %v1812 = vmul.f32 %v1804, %v1801
          %v1813 = vadd.f32 %v1688, %v1805
          %v1814 = vadd.f32 %v1689, %v1806
          %v1815 = vadd.f32 %v1690, %v1807
          %v1816 = vadd.f32 %v1691, %v1808
          %v1817 = vadd.f32 %v1692, %v1809
          %v1818 = vadd.f32 %v1693, %v1810
          %v1819 = vadd.f32 %v1694, %v1811
          %v1820 = vadd.f32 %v1695, %v1812
          %s1821 = scalar_lea.vmem %s249, 256 [#allocation11]
          %1822 = vst [vmem:[%s1821] sm:$0xff] %v1813
          %1823 = vst [vmem:[%s1821 + $0x8] sm:$0xff] %v1814
          %1824 = vst [vmem:[%s1821 + $0x10] sm:$0xff] %v1815
          %1825 = vst [vmem:[%s1821 + $0x18] sm:$0xff] %v1816
          %1826 = vst [vmem:[%s1821 + $0x20] sm:$0xff] %v1817
          %1827 = vst [vmem:[%s1821 + $0x28] sm:$0xff] %v1818
          %1828 = vst [vmem:[%s1821 + $0x30] sm:$0xff] %v1819
          %1829 = vst [vmem:[%s1821 + $0x38] sm:$0xff] %v1820
          %1830 = vmatprep.subr.mxu0 0.0
          %1831 = vmatpush1.msra.mxu0 0.0
          %1832 = vmatprep.subr.mxu0 0.0
          %1833 = vmatpush1.msra.mxu0 0.0
          %1834 = vmatprep.subr.mxu0 0.0
          %1835 = vmatpush1.msra.mxu0 0.0
          %1836 = vmatprep.subr.mxu0 0.0
          %1837 = vmatpush1.msra.mxu0 0.0
          %1838 = vmatprep.subr.mxu0 0.0
          %1839 = vmatpush1.msra.mxu0 0.0
          %1840 = vmatprep.subr.mxu0 0.0
          %1841 = vmatpush1.msra.mxu0 0.0
          %1842 = vmatprep.subr.mxu0 0.0
          %1843 = vmatpush1.msra.mxu0 0.0
          %1844 = vmatprep.subr.mxu0 0.0
          %1845 = vmatpush1.msra.mxu0 0.0
          %1846 = vmatprep.subr.mxu0 0.0
          %1847 = vmatpush1.msra.mxu0 0.0
          %1848 = vmatprep.subr.mxu0 0.0
          %1849 = vmatpush1.msra.mxu0 0.0
          %1850 = vmatprep.subr.mxu0 0.0
          %1851 = vmatpush1.msra.mxu0 0.0
          %1852 = vmatprep.subr.mxu0 0.0
          %1853 = vmatpush1.msra.mxu0 0.0
          %1854 = vmatprep.subr.mxu0 %v1820
          %1855 = vmatpush1.msra.mxu0 %v1819
          %1856 = vmatprep.subr.mxu0 %v1818
          %1857 = vmatpush1.msra.mxu0 %v1817
          %1858 = vmatprep.subr.mxu0 %v1816
          %1859 = vmatpush1.msra.mxu0 %v1815
          %1860 = vmatprep.subr.mxu0 %v1814
          %1861 = vmatpush1.msra.mxu0 %v1813
          %1862 = vmatprep.subr.mxu0 0.0
          %1863 = vmatpush2.msra.mxu0 0.0
          %1864 = vmatprep.subr.mxu0 0.0
          %1865 = vmatpush2.msra.mxu0 0.0
          %1866 = vmatprep.subr.mxu0 0.0
          %1867 = vmatpush2.msra.mxu0 0.0
          %1868 = vmatprep.subr.mxu0 0.0
          %1869 = vmatpush2.msra.mxu0 0.0
          %1870 = vmatprep.subr.mxu0 0.0
          %1871 = vmatpush2.msra.mxu0 0.0
          %1872 = vmatprep.subr.mxu0 0.0
          %1873 = vmatpush2.msra.mxu0 0.0
          %1874 = vmatprep.subr.mxu0 0.0
          %1875 = vmatpush2.msra.mxu0 0.0
          %1876 = vmatprep.subr.mxu0 0.0
          %1877 = vmatpush2.msra.mxu0 0.0
          %1878 = vmatprep.subr.mxu0 0.0
          %1879 = vmatpush2.msra.mxu0 0.0
          %1880 = vmatprep.subr.mxu0 0.0
          %1881 = vmatpush2.msra.mxu0 0.0
          %1882 = vmatprep.subr.mxu0 0.0
          %1883 = vmatpush2.msra.mxu0 0.0
          %1884 = vmatprep.subr.mxu0 0.0
          %1885 = vmatpush2.msra.mxu0 0.0
          %1886 = vmatprep.subr.mxu0 0.0
          %1887 = vmatpush2.msra.mxu0 0.0
          %1888 = vmatprep.subr.mxu0 0.0
          %1889 = vmatpush2.msra.mxu0 0.0
          %1890 = vmatprep.subr.mxu0 0.0
          %1891 = vmatpush2.msra.mxu0 0.0
          %1892 = vmatprep.subr.mxu0 0.0
          %1893 = vmatpush2.msra.mxu0 0.0
          %1894 = vmatprep.mubr.f32.mxu0 0.0
          %1895 = vmatmul.mubr.f32.gmra.mxu0 %v1196
          %v1896 = vpop.f32.mrf.mxu0
          %v1897 = vadd.f32 %v257, %v1896
          %v1898 = vpop.f32.mrf.mxu0
          %v1899 = vadd.f32 %v258, %v1898
          %1900 = vmatprep.mubr.f32.mxu0 0.0
          %1901 = vmatmul.mubr.f32.gmra.mxu0 %v1199
          %v1902 = vpop.f32.mrf.mxu0
          %v1903 = vadd.f32 %v259, %v1902
          %v1904 = vpop.f32.mrf.mxu0
          %v1905 = vadd.f32 %v260, %v1904
          %1906 = vmatprep.mubr.f32.mxu0 0.0
          %1907 = vmatmul.mubr.f32.gmra.mxu0 %v1202
          %v1908 = vpop.f32.mrf.mxu0
          %v1909 = vadd.f32 %v261, %v1908
          %v1910 = vpop.f32.mrf.mxu0
          %v1911 = vadd.f32 %v262, %v1910
          %1912 = vmatprep.mubr.f32.mxu0 0.0
          %1913 = vmatmul.mubr.f32.gmra.mxu0 %v1205
          %v1914 = vpop.f32.mrf.mxu0
          %v1915 = vadd.f32 %v263, %v1914
          %v1916 = vpop.f32.mrf.mxu0
          %v1917 = vadd.f32 %v264, %v1916
          %1918 = vdwg.mxu0
          %v1919 = vtanh.pop %v1897
          %v1920 = vtanh.pop %v1899
          %v1921 = vtanh.pop %v1903
          %v1922 = vtanh.pop %v1905
          %v1923 = vtanh.pop %v1909
          %v1924 = vtanh.pop %v1911
          %v1925 = vtanh.pop %v1915
          %v1926 = vtanh.pop %v1917
          %s1927 = sadd.s32 %s1193, 4
          %s1928 = sld [smem:[#allocation4 + %s1927]]
          %v1929 = vstv %s1928
          %v1930 = vmul.f32 %v1929, %v1919
          %v1931 = vmul.f32 %v1929, %v1920
          %v1932 = vmul.f32 %v1929, %v1921
          %v1933 = vmul.f32 %v1929, %v1922
          %v1934 = vmul.f32 %v1929, %v1923
          %v1935 = vmul.f32 %v1929, %v1924
          %v1936 = vmul.f32 %v1929, %v1925
          %v1937 = vmul.f32 %v1929, %v1926
          %v1938 = vadd.f32 %v1813, %v1930
          %v1939 = vadd.f32 %v1814, %v1931
          %v1940 = vadd.f32 %v1815, %v1932
          %v1941 = vadd.f32 %v1816, %v1933
          %v1942 = vadd.f32 %v1817, %v1934
          %v1943 = vadd.f32 %v1818, %v1935
          %v1944 = vadd.f32 %v1819, %v1936
          %v1945 = vadd.f32 %v1820, %v1937
          %s1946 = scalar_lea.vmem %s249, 320 [#allocation11]
          %1947 = vst [vmem:[%s1946] sm:$0xff] %v1938
          %1948 = vst [vmem:[%s1946 + $0x8] sm:$0xff] %v1939
          %1949 = vst [vmem:[%s1946 + $0x10] sm:$0xff] %v1940
          %1950 = vst [vmem:[%s1946 + $0x18] sm:$0xff] %v1941
          %1951 = vst [vmem:[%s1946 + $0x20] sm:$0xff] %v1942
          %1952 = vst [vmem:[%s1946 + $0x28] sm:$0xff] %v1943
          %1953 = vst [vmem:[%s1946 + $0x30] sm:$0xff] %v1944
          %1954 = vst [vmem:[%s1946 + $0x38] sm:$0xff] %v1945
          %1955 = vmatprep.subr.mxu0 0.0
          %1956 = vmatpush1.msra.mxu0 0.0
          %1957 = vmatprep.subr.mxu0 0.0
          %1958 = vmatpush1.msra.mxu0 0.0
          %1959 = vmatprep.subr.mxu0 0.0
          %1960 = vmatpush1.msra.mxu0 0.0
          %1961 = vmatprep.subr.mxu0 0.0
          %1962 = vmatpush1.msra.mxu0 0.0
          %1963 = vmatprep.subr.mxu0 0.0
          %1964 = vmatpush1.msra.mxu0 0.0
          %1965 = vmatprep.subr.mxu0 0.0
          %1966 = vmatpush1.msra.mxu0 0.0
          %1967 = vmatprep.subr.mxu0 0.0
          %1968 = vmatpush1.msra.mxu0 0.0
          %1969 = vmatprep.subr.mxu0 0.0
          %1970 = vmatpush1.msra.mxu0 0.0
          %1971 = vmatprep.subr.mxu0 0.0
          %1972 = vmatpush1.msra.mxu0 0.0
          %1973 = vmatprep.subr.mxu0 0.0
          %1974 = vmatpush1.msra.mxu0 0.0
          %1975 = vmatprep.subr.mxu0 0.0
          %1976 = vmatpush1.msra.mxu0 0.0
          %1977 = vmatprep.subr.mxu0 0.0
          %1978 = vmatpush1.msra.mxu0 0.0
          %1979 = vmatprep.subr.mxu0 %v1945
          %1980 = vmatpush1.msra.mxu0 %v1944
          %1981 = vmatprep.subr.mxu0 %v1943
          %1982 = vmatpush1.msra.mxu0 %v1942
          %1983 = vmatprep.subr.mxu0 %v1941
          %1984 = vmatpush1.msra.mxu0 %v1940
          %1985 = vmatprep.subr.mxu0 %v1939
          %1986 = vmatpush1.msra.mxu0 %v1938
          %1987 = vmatprep.subr.mxu0 0.0
          %1988 = vmatpush2.msra.mxu0 0.0
          %1989 = vmatprep.subr.mxu0 0.0
          %1990 = vmatpush2.msra.mxu0 0.0
          %1991 = vmatprep.subr.mxu0 0.0
          %1992 = vmatpush2.msra.mxu0 0.0
          %1993 = vmatprep.subr.mxu0 0.0
          %1994 = vmatpush2.msra.mxu0 0.0
          %1995 = vmatprep.subr.mxu0 0.0
          %1996 = vmatpush2.msra.mxu0 0.0
          %1997 = vmatprep.subr.mxu0 0.0
          %1998 = vmatpush2.msra.mxu0 0.0
          %1999 = vmatprep.subr.mxu0 0.0
          %2000 = vmatpush2.msra.mxu0 0.0
          %2001 = vmatprep.subr.mxu0 0.0
          %2002 = vmatpush2.msra.mxu0 0.0
          %2003 = vmatprep.subr.mxu0 0.0
          %2004 = vmatpush2.msra.mxu0 0.0
          %2005 = vmatprep.subr.mxu0 0.0
          %2006 = vmatpush2.msra.mxu0 0.0
          %2007 = vmatprep.subr.mxu0 0.0
          %2008 = vmatpush2.msra.mxu0 0.0
          %2009 = vmatprep.subr.mxu0 0.0
          %2010 = vmatpush2.msra.mxu0 0.0
          %2011 = vmatprep.subr.mxu0 0.0
          %2012 = vmatpush2.msra.mxu0 0.0
          %2013 = vmatprep.subr.mxu0 0.0
          %2014 = vmatpush2.msra.mxu0 0.0
          %2015 = vmatprep.subr.mxu0 0.0
          %2016 = vmatpush2.msra.mxu0 0.0
          %2017 = vmatprep.subr.mxu0 0.0
          %2018 = vmatpush2.msra.mxu0 0.0
          %2019 = vmatprep.mubr.f32.mxu0 0.0
          %2020 = vmatmul.mubr.f32.gmra.mxu0 %v1196
          %v2021 = vpop.f32.mrf.mxu0
          %v2022 = vadd.f32 %v257, %v2021
          %v2023 = vpop.f32.mrf.mxu0
          %v2024 = vadd.f32 %v258, %v2023
          %2025 = vmatprep.mubr.f32.mxu0 0.0
          %2026 = vmatmul.mubr.f32.gmra.mxu0 %v1199
          %v2027 = vpop.f32.mrf.mxu0
          %v2028 = vadd.f32 %v259, %v2027
          %v2029 = vpop.f32.mrf.mxu0
          %v2030 = vadd.f32 %v260, %v2029
          %2031 = vmatprep.mubr.f32.mxu0 0.0
          %2032 = vmatmul.mubr.f32.gmra.mxu0 %v1202
          %v2033 = vpop.f32.mrf.mxu0
          %v2034 = vadd.f32 %v261, %v2033
          %v2035 = vpop.f32.mrf.mxu0
          %v2036 = vadd.f32 %v262, %v2035
          %2037 = vmatprep.mubr.f32.mxu0 0.0
          %2038 = vmatmul.mubr.f32.gmra.mxu0 %v1205
          %v2039 = vpop.f32.mrf.mxu0
          %v2040 = vadd.f32 %v263, %v2039
          %v2041 = vpop.f32.mrf.mxu0
          %v2042 = vadd.f32 %v264, %v2041
          %2043 = vdwg.mxu0
          %v2044 = vtanh.pop %v2022
          %v2045 = vtanh.pop %v2024
          %v2046 = vtanh.pop %v2028
          %v2047 = vtanh.pop %v2030
          %v2048 = vtanh.pop %v2034
          %v2049 = vtanh.pop %v2036
          %v2050 = vtanh.pop %v2040
          %v2051 = vtanh.pop %v2042
          %s2052 = sadd.s32 %s1193, 5
          %s2053 = sld [smem:[#allocation4 + %s2052]]
          %v2054 = vstv %s2053
          %v2055 = vmul.f32 %v2054, %v2044
          %v2056 = vmul.f32 %v2054, %v2045
          %v2057 = vmul.f32 %v2054, %v2046
          %v2058 = vmul.f32 %v2054, %v2047
          %v2059 = vmul.f32 %v2054, %v2048
          %v2060 = vmul.f32 %v2054, %v2049
          %v2061 = vmul.f32 %v2054, %v2050
          %v2062 = vmul.f32 %v2054, %v2051
          %v2063 = vadd.f32 %v1938, %v2055
          %v2064 = vadd.f32 %v1939, %v2056
          %v2065 = vadd.f32 %v1940, %v2057
          %v2066 = vadd.f32 %v1941, %v2058
          %v2067 = vadd.f32 %v1942, %v2059
          %v2068 = vadd.f32 %v1943, %v2060
          %v2069 = vadd.f32 %v1944, %v2061
          %v2070 = vadd.f32 %v1945, %v2062
          %s2071 = scalar_lea.vmem %s249, 384 [#allocation11]
          %2072 = vst [vmem:[%s2071] sm:$0xff] %v2063
          %2073 = vst [vmem:[%s2071 + $0x8] sm:$0xff] %v2064
          %2074 = vst [vmem:[%s2071 + $0x10] sm:$0xff] %v2065
          %2075 = vst [vmem:[%s2071 + $0x18] sm:$0xff] %v2066
          %2076 = vst [vmem:[%s2071 + $0x20] sm:$0xff] %v2067
          %2077 = vst [vmem:[%s2071 + $0x28] sm:$0xff] %v2068
          %2078 = vst [vmem:[%s2071 + $0x30] sm:$0xff] %v2069
          %2079 = vst [vmem:[%s2071 + $0x38] sm:$0xff] %v2070
          %2080 = vmatprep.subr.mxu0 0.0
          %2081 = vmatpush1.msra.mxu0 0.0
          %2082 = vmatprep.subr.mxu0 0.0
          %2083 = vmatpush1.msra.mxu0 0.0
          %2084 = vmatprep.subr.mxu0 0.0
          %2085 = vmatpush1.msra.mxu0 0.0
          %2086 = vmatprep.subr.mxu0 0.0
          %2087 = vmatpush1.msra.mxu0 0.0
          %2088 = vmatprep.subr.mxu0 0.0
          %2089 = vmatpush1.msra.mxu0 0.0
          %2090 = vmatprep.subr.mxu0 0.0
          %2091 = vmatpush1.msra.mxu0 0.0
          %2092 = vmatprep.subr.mxu0 0.0
          %2093 = vmatpush1.msra.mxu0 0.0
          %2094 = vmatprep.subr.mxu0 0.0
          %2095 = vmatpush1.msra.mxu0 0.0
          %2096 = vmatprep.subr.mxu0 0.0
          %2097 = vmatpush1.msra.mxu0 0.0
          %2098 = vmatprep.subr.mxu0 0.0
          %2099 = vmatpush1.msra.mxu0 0.0
          %2100 = vmatprep.subr.mxu0 0.0
          %2101 = vmatpush1.msra.mxu0 0.0
          %2102 = vmatprep.subr.mxu0 0.0
          %2103 = vmatpush1.msra.mxu0 0.0
          %2104 = vmatprep.subr.mxu0 %v2070
          %2105 = vmatpush1.msra.mxu0 %v2069
          %2106 = vmatprep.subr.mxu0 %v2068
          %2107 = vmatpush1.msra.mxu0 %v2067
          %2108 = vmatprep.subr.mxu0 %v2066
          %2109 = vmatpush1.msra.mxu0 %v2065
          %2110 = vmatprep.subr.mxu0 %v2064
          %2111 = vmatpush1.msra.mxu0 %v2063
          %2112 = vmatprep.subr.mxu0 0.0
          %2113 = vmatpush2.msra.mxu0 0.0
          %2114 = vmatprep.subr.mxu0 0.0
          %2115 = vmatpush2.msra.mxu0 0.0
          %2116 = vmatprep.subr.mxu0 0.0
          %2117 = vmatpush2.msra.mxu0 0.0
          %2118 = vmatprep.subr.mxu0 0.0
          %2119 = vmatpush2.msra.mxu0 0.0
          %2120 = vmatprep.subr.mxu0 0.0
          %2121 = vmatpush2.msra.mxu0 0.0
          %2122 = vmatprep.subr.mxu0 0.0
          %2123 = vmatpush2.msra.mxu0 0.0
          %2124 = vmatprep.subr.mxu0 0.0
          %2125 = vmatpush2.msra.mxu0 0.0
          %2126 = vmatprep.subr.mxu0 0.0
          %2127 = vmatpush2.msra.mxu0 0.0
          %2128 = vmatprep.subr.mxu0 0.0
          %2129 = vmatpush2.msra.mxu0 0.0
          %2130 = vmatprep.subr.mxu0 0.0
          %2131 = vmatpush2.msra.mxu0 0.0
          %2132 = vmatprep.subr.mxu0 0.0
          %2133 = vmatpush2.msra.mxu0 0.0
          %2134 = vmatprep.subr.mxu0 0.0
          %2135 = vmatpush2.msra.mxu0 0.0
          %2136 = vmatprep.subr.mxu0 0.0
          %2137 = vmatpush2.msra.mxu0 0.0
          %2138 = vmatprep.subr.mxu0 0.0
          %2139 = vmatpush2.msra.mxu0 0.0
          %2140 = vmatprep.subr.mxu0 0.0
          %2141 = vmatpush2.msra.mxu0 0.0
          %2142 = vmatprep.subr.mxu0 0.0
          %2143 = vmatpush2.msra.mxu0 0.0
          %2144 = vmatprep.mubr.f32.mxu0 0.0
          %2145 = vmatmul.mubr.f32.gmra.mxu0 %v1196
          %v2146 = vpop.f32.mrf.mxu0
          %v2147 = vadd.f32 %v257, %v2146
          %v2148 = vpop.f32.mrf.mxu0
          %v2149 = vadd.f32 %v258, %v2148
          %2150 = vmatprep.mubr.f32.mxu0 0.0
          %2151 = vmatmul.mubr.f32.gmra.mxu0 %v1199
          %v2152 = vpop.f32.mrf.mxu0
          %v2153 = vadd.f32 %v259, %v2152
          %v2154 = vpop.f32.mrf.mxu0
          %v2155 = vadd.f32 %v260, %v2154
          %2156 = vmatprep.mubr.f32.mxu0 0.0
          %2157 = vmatmul.mubr.f32.gmra.mxu0 %v1202
          %v2158 = vpop.f32.mrf.mxu0
          %v2159 = vadd.f32 %v261, %v2158
          %v2160 = vpop.f32.mrf.mxu0
          %v2161 = vadd.f32 %v262, %v2160
          %2162 = vmatprep.mubr.f32.mxu0 0.0
          %2163 = vmatmul.mubr.f32.gmra.mxu0 %v1205
          %v2164 = vpop.f32.mrf.mxu0
          %v2165 = vadd.f32 %v263, %v2164
          %v2166 = vpop.f32.mrf.mxu0
          %v2167 = vadd.f32 %v264, %v2166
          %2168 = vdwg.mxu0
          %v2169 = vtanh.pop %v2147
          %v2170 = vtanh.pop %v2149
          %v2171 = vtanh.pop %v2153
          %v2172 = vtanh.pop %v2155
          %v2173 = vtanh.pop %v2159
          %v2174 = vtanh.pop %v2161
          %v2175 = vtanh.pop %v2165
          %v2176 = vtanh.pop %v2167
          %s2177 = sadd.s32 %s1193, 6
          %s2178 = sld [smem:[#allocation4 + %s2177]]
          %v2179 = vstv %s2178
          %v2180 = vmul.f32 %v2179, %v2169
          %v2181 = vmul.f32 %v2179, %v2170
          %v2182 = vmul.f32 %v2179, %v2171
          %v2183 = vmul.f32 %v2179, %v2172
          %v2184 = vmul.f32 %v2179, %v2173
          %v2185 = vmul.f32 %v2179, %v2174
          %v2186 = vmul.f32 %v2179, %v2175
          %v2187 = vmul.f32 %v2179, %v2176
          %v2188 = vadd.f32 %v2063, %v2180
          %v2189 = vadd.f32 %v2064, %v2181
          %v2190 = vadd.f32 %v2065, %v2182
          %v2191 = vadd.f32 %v2066, %v2183
          %v2192 = vadd.f32 %v2067, %v2184
          %v2193 = vadd.f32 %v2068, %v2185
          %v2194 = vadd.f32 %v2069, %v2186
          %v2195 = vadd.f32 %v2070, %v2187
          %s2196 = scalar_lea.vmem %s249, 448 [#allocation11]
          %2197 = vst [vmem:[%s2196] sm:$0xff] %v2188
          %2198 = vst [vmem:[%s2196 + $0x8] sm:$0xff] %v2189
          %2199 = vst [vmem:[%s2196 + $0x10] sm:$0xff] %v2190
          %2200 = vst [vmem:[%s2196 + $0x18] sm:$0xff] %v2191
          %2201 = vst [vmem:[%s2196 + $0x20] sm:$0xff] %v2192
          %2202 = vst [vmem:[%s2196 + $0x28] sm:$0xff] %v2193
          %2203 = vst [vmem:[%s2196 + $0x30] sm:$0xff] %v2194
          %2204 = vst [vmem:[%s2196 + $0x38] sm:$0xff] %v2195
          %2205 = vst [vmem:[#allocation2] sm:$0xff] %v2188
          %2206 = vst [vmem:[#allocation2 + $0x8] sm:$0xff] %v2189
          %2207 = vst [vmem:[#allocation2 + $0x10] sm:$0xff] %v2190
          %2208 = vst [vmem:[#allocation2 + $0x18] sm:$0xff] %v2191
          %2209 = vst [vmem:[#allocation2 + $0x20] sm:$0xff] %v2192
          %2210 = vst [vmem:[#allocation2 + $0x28] sm:$0xff] %v2193
          %2211 = vst [vmem:[#allocation2 + $0x30] sm:$0xff] %v2194
          %2212 = vst [vmem:[#allocation2 + $0x38] sm:$0xff] %v2195
        $region52: #{tpu_custom_call.1} parent=31 // pred_fallthru
          _
        %s2213 = sand.u32 %s127, 1
        %s2214 = scalar_lea.sflag [#allocation7], %s2213
        %s2215 = sand.u32 %s127, 1
        %s2216 = smul.addr %s2215, 512
        %s2217 = scalar_lea.vmem [#allocation11], %s2216
        // Predicated region
        $region53: #{tpu_custom_call.1} parent=31 // pred_check
          %p2218 = pneg %p137
        $region54: #{tpu_custom_call.1} parent=31 // pred_check_branch
          %2220 = sbr.rel (%p2218) target = $region56
        $region55: #{tpu_custom_call.1} parent=31 // pred_region
          %s2221 = smul.u32 8, %s33
          %s2222 = smul.u32 2, %s32
          %s2224 = ssub.s32 8192, 8192
          %2225 = vsyncadd %s2214, %s2224
          %s2226 = smul.addr %s2221, 8
          %s2227 = sadd.s32 %s2222, %s2226
          %s2228 = smul.addr %s31, 64
          %s2229 = sadd.s32 %s2227, %s2228
          %s2230 = smul.addr %s2229, 128
          %s2231 = scalar_lea.hbm %s4, %s2230
          %s2232 = sshll.u32 %s2217, 4
          %s2233 = int_to_ptr.vmem [resolvable:$true] %s2232
          %2238 = dma.vmem_to_hbm [thread:$0]  %s2233, 8192, %s2231, %s2214, 256, 256, 16
        $region56: #{tpu_custom_call.1} parent=31 // pred_fallthru
          _
      $region32: #{tpu_custom_call.1} parent=5 // pred_fallthru
        _
      %p2239 = scmp.le.s32.totalorder 2, %s21
      // Predicated region
      $region57: #{tpu_custom_call.1} parent=5 // pred_check
        %p2240 = pneg %p2239
      $region58: #{tpu_custom_call.1} parent=5 // pred_check_branch
        %2242 = sbr.rel (%p2240) target = $region60
      $region59: #{tpu_custom_call.1} parent=5 // pred_region
        %s2243 = ssub.s32 %s21, 2
        // Predicated region
        $region61: #{tpu_custom_call.1} parent=59 // pred_check
          %p2244 = pneg %p143
        $region62: #{tpu_custom_call.1} parent=59 // pred_check_branch
          %2246 = sbr.rel (%p2244) target = $region64
        $region63: #{tpu_custom_call.1} parent=59 // pred_region
          %s2247 = sand.u32 %s128, 1
          %s2248 = scalar_lea.sflag [#allocation7], %s2247
          %s2249 = sand.u32 %s128, 1
          %s2250 = smul.addr %s2249, 512
          %s2251 = scalar_lea.vmem [#allocation11], %s2250
          %2252 = dma.done %s2248, 8192
        $region64: #{tpu_custom_call.1} parent=59 // pred_fallthru
          _
      $region60: #{tpu_custom_call.1} parent=5 // pred_fallthru
        _
    $region6: #{tpu_custom_call.1} parent=1 // loop_footer
      %s25 = sadd.s32 1, %s21
    $region7: #{tpu_custom_call.1} parent=1 // loop_footer_branch
      %20 = sbr.rel target = $region3
    $region8: #{tpu_custom_call.1} parent=1 // loop_exit
      _
    %2253 = vsyncpa [#allocation6], 1
    %s2254 = scalar_lea.sflag [#allocation6], 1
    %2255 = vsyncpa %s2254, 1
    %2256 = vsyncpa [#allocation9], 1
    %2257 = vsyncpa [#allocation7], 1
    %s2258 = scalar_lea.sflag [#allocation7], 1
    %2259 = vsyncpa %s2258, 1

</llo_original>
